<compile_context>
chip_gen: v7x
topology: tpu7x:2x2x1
jax: 0.10.0
libtpu: 0.0.40
codegen_flags: <defaults>
</compile_context>

<pallas_src>
import functools

import jax
import jax.numpy as jnp
from jax.experimental import pallas as pl
from jax.experimental.pallas import tpu as pltpu


def _round_up(x, m):
    return ((x + m - 1) // m) * m


def _sigmoid_f32(z):
    # Single EUP transcendental (tanh); the 0.5 mul/add land on the 4-wide VALU.
    return 0.5 * jnp.tanh(0.5 * z) + 0.5


def _autoencoder_kernel(x_ref, wg_ref, bg_ref, wh_ref, bh_ref, o_ref):
    """Fused forward: sigmoid(h(sigmoid(g(x)))) on one (tile_b, Np) batch tile."""
    x = x_ref[...].astype(jnp.bfloat16)                                   # (tb, Np) bf16
    # g: Linear(num_question -> k) + sigmoid  (bf16 MXU operands, f32 accumulate)
    g_lin = jnp.dot(x, wg_ref[...], preferred_element_type=jnp.float32)   # (tb, Kp) f32
    g_act = _sigmoid_f32(g_lin + bg_ref[...])                             # bias (1, Kp) bcast
    # h: Linear(k -> num_question) + sigmoid
    h_lin = jnp.dot(g_act.astype(jnp.bfloat16), wh_ref[...],
                    preferred_element_type=jnp.float32)                   # (tb, Np) f32
    h_act = _sigmoid_f32(h_lin + bh_ref[...])                             # bias (1, Np) bcast
    o_ref[...] = h_act.astype(o_ref.dtype)                                # bf16 store


def prepare_params(wg, bg, wh, bh):
    """One-time conversion of PyTorch-layout params to kernel layout.

    wg: (K, N) g.weight, bg: (K,) g.bias, wh: (N, K) h.weight, bh: (N,) h.bias.
    Returns (wg_t, bg_p, wh_t, bh_p) padded to multiples of 128 and cast
    (weights bf16, biases f32). Zero padding is numerically exact: padded input
    columns hit zero weight rows, padded hidden units have zero outgoing weights,
    padded output columns are sliced off in the forward wrapper.
    """
    K, N = wg.shape
    Np, Kp = _round_up(N, 128), _round_up(K, 128)
    bf16, f32 = jnp.bfloat16, jnp.float32
    if N == Np and K == Kp:
        wg_t = wg.T.astype(bf16)
        bg_p = bg.astype(f32).reshape(1, Kp)
        wh_t = wh.T.astype(bf16)
        bh_p = bh.astype(f32).reshape(1, Np)
    else:
        wg_t = jnp.zeros((Np, Kp), bf16).at[:N, :K].set(wg.T.astype(bf16))
        bg_p = jnp.zeros((1, Kp), f32).at[0, :K].set(bg.astype(f32))
        wh_t = jnp.zeros((Kp, Np), bf16).at[:K, :N].set(wh.T.astype(bf16))
        bh_p = jnp.zeros((1, Np), f32).at[0, :N].set(bh.astype(f32))
    return wg_t, bg_p, wh_t, bh_p


def _choose_tiling(B, tile_b):
    """Pick (padded batch, batch tile, grid steps); all multiples of 16 rows."""
    tile_b = max(16, _round_up(tile_b, 16))
    Bp = _round_up(B, 16)
    tile_eff = min(tile_b, Bp)
    # Force >= 2 grid steps when the batch allows: keeps both v7x TensorCores busy
    # under dimension_semantics=("parallel",); costs one extra ~0.35us step on
    # single-TC v5e/v6e, which is negligible.
    if Bp >= 32 and Bp // tile_eff < 2:
        tile_eff = _round_up((Bp + 1) // 2, 16)
    Bp = _round_up(Bp, tile_eff)
    return Bp, tile_eff, Bp // tile_eff


@functools.partial(jax.jit, static_argnames=("tile_b", "out_dtype"))
def autoencoder_forward(x, wg_t, bg_p, wh_t, bh_p, *,
                        tile_b=512, out_dtype=jnp.bfloat16):
    """Forward pass matching the PyTorch AutoEncoder.

    x : (B, N) float32 user vectors; wg_t/bg_p/wh_t/bh_p from prepare_params().
    Returns (B, N) in `out_dtype` (default bf16; pass jnp.float32 to upcast).
    """
    B, N = x.shape
    Np, Kp = wg_t.shape
    Bp, tile_eff, steps = _choose_tiling(B, tile_b)

    # Fast path: no wrapper-side copy at all when shapes are already aligned; the
    # kernel reads f32 x directly and casts to bf16 in VMEM. Padding path does a
    # single fused pad+cast pass (bf16 write) only when needed.
    if B == Bp and N == Np:
        x_p = x
    else:
        x_p = jnp.pad(x, ((0, Bp - B), (0, Np - N))).astype(jnp.bfloat16)
    x_bytes = x_p.dtype.itemsize

    # VMEM budget: double-buffered x/out tiles + resident weights (default
    # double-buffered; constant index maps mean they are only DMA'd once) +
    # f32 intermediates. Clamp at 48 MiB to leave headroom on v7x's 64 MiB.
    tile_in_bytes = tile_eff * Np * x_bytes
    tile_out_bytes = tile_eff * Np * 2
    weight_bytes = (Np * Kp + Kp * Np) * 2
    bias_bytes = (Kp + Np) * 4
    inter_bytes = tile_eff * (Kp + Np) * 4
    vmem_bytes = (2 * (tile_in_bytes + tile_out_bytes) + 2 * weight_bytes
                  + 2 * bias_bytes + inter_bytes + (4 << 20))
    vmem_limit = int(min(max(vmem_bytes, 16 << 20), 48 << 20))

    cost = pl.CostEstimate(
        flops=4 * Bp * Np * Kp,                       # two matmuls, 2*M*N*K each
        transcendentals=Bp * (Kp + Np),               # one tanh per sigmoid element
        bytes_accessed=(Bp * Np * x_bytes             # x stream in
                        + Bp * Np * 2                 # bf16 out stream back
                        + weight_bytes + bias_bytes),
    )

    out_p = pl.pallas_call(
        _autoencoder_kernel,
        out_shape=jax.ShapeDtypeStruct((Bp, Np), jnp.bfloat16),
        grid_spec=pltpu.PrefetchScalarGridSpec(
            num_scalar_prefetch=0,
            grid=(steps,),
            in_specs=[
                pl.BlockSpec((tile_eff, Np), lambda i: (i, 0)),  # x batch tile (streamed)
                pl.BlockSpec((Np, Kp), lambda i: (0, 0)),        # W_g^T (resident)
                pl.BlockSpec((1, Kp), lambda i: (0, 0)),         # b_g
                pl.BlockSpec((Kp, Np), lambda i: (0, 0)),        # W_h^T (resident)
                pl.BlockSpec((1, Np), lambda i: (0, 0)),         # b_h
            ],
            out_specs=pl.BlockSpec((tile_eff, Np), lambda i: (i, 0)),
        ),
        compiler_params=pltpu.CompilerParams(
            dimension_semantics=("parallel",),
            vmem_limit_bytes=vmem_limit,
        ),
        cost_estimate=cost,
    )(x_p, wg_t, bg_p, wh_t, bh_p)

    out = out_p[:B, :N]                 # identity slice (no copy) on the fast path
    if out.dtype != out_dtype:
        out = out.astype(out_dtype)
    return out


def init_params(key, num_question, k):
    """PyTorch-style nn.Linear init (uniform in +/- 1/sqrt(fan_in)), PyTorch layouts."""
    kg_w, kg_b, kh_w, kh_b = jax.random.split(key, 4)
    bound_g = 1.0 / (num_question ** 0.5)
    wg = jax.random.uniform(kg_w, (k, num_question), jnp.float32, -bound_g, bound_g)
    bg = jax.random.uniform(kg_b, (k,), jnp.float32, -bound_g, bound_g)
    bound_h = 1.0 / (k ** 0.5)
    wh = jax.random.uniform(kh_w, (num_question, k), jnp.float32, -bound_h, bound_h)
    bh = jax.random.uniform(kh_b, (num_question,), jnp.float32, -bound_h, bound_h)
    return wg, bg, wh, bh


def _reference(x, wg, bg, wh, bh):
    g = jax.nn.sigmoid(x @ wg.T + bg)
    return jax.nn.sigmoid(g @ wh.T + bh)


if __name__ == "__main__":
    key = jax.random.PRNGKey(0)
    k_p1, k_x1, k_p2, k_x2 = jax.random.split(key, 4)

    # Case 1: lane-aligned shapes -> zero-copy fast path (f32 x straight into the
    # kernel), grid of 2 parallel 256-row batch tiles (both v7x TCs busy).
    nq1, hid1, batch1 = 256, 128, 512
    params1 = init_params(k_p1, nq1, hid1)
    kparams1 = prepare_params(*params1)          # one-time transpose/pad/cast
    x1 = jax.random.uniform(k_x1, (batch1, nq1), jnp.float32)
    out1 = jax.block_until_ready(autoencoder_forward(x1, *kparams1))
    ref1 = _reference(x1, *params1)
    assert out1.shape == (batch1, nq1) and out1.dtype == jnp.bfloat16
    err1 = float(jnp.max(jnp.abs(out1.astype(jnp.float32) - ref1)))
    assert jnp.allclose(out1.astype(jnp.float32), ref1, atol=2e-2, rtol=2e-2), \
        f"case1 max abs err {err1}"

    # Case 2: ragged shapes (module default k=100) -> padding path, f32 output.
    nq2, hid2, batch2 = 200, 100, 100
    params2 = init_params(k_p2, nq2, hid2)
    kparams2 = prepare_params(*params2)
    x2 = jax.random.uniform(k_x2, (batch2, nq2), jnp.float32)
    out2 = jax.block_until_ready(
        autoencoder_forward(x2, *kparams2, out_dtype=jnp.float32))
    ref2 = _reference(x2, *params2)
    assert out2.shape == (batch2, nq2) and out2.dtype == jnp.float32
    err2 = float(jnp.max(jnp.abs(out2 - ref2)))
    assert jnp.allclose(out2, ref2, atol=2e-2, rtol=2e-2), \
        f"case2 max abs err {err2}"

    print("KERNEL_OK")
</pallas_src>

<mosaic_0001>
module attributes {stable_mosaic.version = 11 : i64} {
  func.func @_autoencoder_kernel(%arg0: i32, %arg1: memref<256x256xf32, #tpu.memory_space<vmem>>, %arg2: memref<256x128xbf16, #tpu.memory_space<vmem>>, %arg3: memref<1x128xf32, #tpu.memory_space<vmem>>, %arg4: memref<128x256xbf16, #tpu.memory_space<vmem>>, %arg5: memref<1x256xf32, #tpu.memory_space<vmem>>, %arg6: memref<256x256xbf16, #tpu.memory_space<vmem>>) attributes {dimension_semantics = [#tpu.dimension_semantics<parallel>], iteration_bounds = array<i64: 2>, scalar_prefetch = 0 : i64, scratch_operands = 0 : i64, tpu.core_type = #tpu.core_type<tc>, window_params = [{transform_indices = @transform_0, window_bounds = array<i64: 256, 256>}, {pipeline_mode = #tpu.pipeline_mode<synchronous>, transform_indices = @transform_1, window_bounds = array<i64: 256, 128>}, {pipeline_mode = #tpu.pipeline_mode<synchronous>, transform_indices = @transform_2, window_bounds = array<i64: 1, 128>}, {pipeline_mode = #tpu.pipeline_mode<synchronous>, transform_indices = @transform_3, window_bounds = array<i64: 128, 256>}, {pipeline_mode = #tpu.pipeline_mode<synchronous>, transform_indices = @transform_4, window_bounds = array<i64: 1, 256>}, {transform_indices = @transform_5, window_bounds = array<i64: 256, 256>}]} {
    %c0 = arith.constant 0 : index
    %c0_0 = arith.constant 0 : index
    %0 = vector.load %arg1[%c0, %c0_0] : memref<256x256xf32, #tpu.memory_space<vmem>>, vector<256x256xf32>
    %1 = arith.truncf %0 : vector<256x256xf32> to vector<256x256xbf16>
    %c0_1 = arith.constant 0 : index
    %c0_2 = arith.constant 0 : index
    %2 = vector.load %arg2[%c0_1, %c0_2] : memref<256x128xbf16, #tpu.memory_space<vmem>>, vector<256x128xbf16>
    %cst = arith.constant dense<0.000000e+00> : vector<256x128xf32>
    %3 = tpu.matmul %1, %2, %cst {dimension_numbers = #tpu.dot_dimension_numbers<[1], [0], [0], [1], [0, 0, 1, 1], [], []>} : vector<256x256xbf16>, vector<256x128xbf16>, vector<256x128xf32> -> vector<256x128xf32>
    %c0_3 = arith.constant 0 : index
    %c0_4 = arith.constant 0 : index
    %4 = vector.load %arg3[%c0_3, %c0_4] : memref<1x128xf32, #tpu.memory_space<vmem>>, vector<1x128xf32>
    %5 = vector.broadcast %4 : vector<1x128xf32> to vector<256x128xf32>
    %6 = arith.addf %3, %5 : vector<256x128xf32>
    %cst_5 = arith.constant 5.000000e-01 : f32
    %7 = vector.broadcast %cst_5 : f32 to vector<256x128xf32>
    %8 = arith.mulf %7, %6 : vector<256x128xf32>
    %9 = math.tanh %8 : vector<256x128xf32>
    %cst_6 = arith.constant 5.000000e-01 : f32
    %10 = vector.broadcast %cst_6 : f32 to vector<256x128xf32>
    %11 = arith.mulf %10, %9 : vector<256x128xf32>
    %cst_7 = arith.constant 5.000000e-01 : f32
    %12 = vector.broadcast %cst_7 : f32 to vector<256x128xf32>
    %13 = arith.addf %11, %12 : vector<256x128xf32>
    %14 = arith.truncf %13 : vector<256x128xf32> to vector<256x128xbf16>
    %c0_8 = arith.constant 0 : index
    %c0_9 = arith.constant 0 : index
    %15 = vector.load %arg4[%c0_8, %c0_9] : memref<128x256xbf16, #tpu.memory_space<vmem>>, vector<128x256xbf16>
    %cst_10 = arith.constant dense<0.000000e+00> : vector<256x256xf32>
    %16 = tpu.matmul %14, %15, %cst_10 {dimension_numbers = #tpu.dot_dimension_numbers<[1], [0], [0], [1], [0, 0, 1, 1], [], []>} : vector<256x128xbf16>, vector<128x256xbf16>, vector<256x256xf32> -> vector<256x256xf32>
    %c0_11 = arith.constant 0 : index
    %c0_12 = arith.constant 0 : index
    %17 = vector.load %arg5[%c0_11, %c0_12] : memref<1x256xf32, #tpu.memory_space<vmem>>, vector<1x256xf32>
    %18 = vector.broadcast %17 : vector<1x256xf32> to vector<256x256xf32>
    %19 = arith.addf %16, %18 : vector<256x256xf32>
    %cst_13 = arith.constant 5.000000e-01 : f32
    %20 = vector.broadcast %cst_13 : f32 to vector<256x256xf32>
    %21 = arith.mulf %20, %19 : vector<256x256xf32>
    %22 = math.tanh %21 : vector<256x256xf32>
    %cst_14 = arith.constant 5.000000e-01 : f32
    %23 = vector.broadcast %cst_14 : f32 to vector<256x256xf32>
    %24 = arith.mulf %23, %22 : vector<256x256xf32>
    %cst_15 = arith.constant 5.000000e-01 : f32
    %25 = vector.broadcast %cst_15 : f32 to vector<256x256xf32>
    %26 = arith.addf %24, %25 : vector<256x256xf32>
    %27 = arith.truncf %26 : vector<256x256xf32> to vector<256x256xbf16>
    %c0_16 = arith.constant 0 : index
    %c0_17 = arith.constant 0 : index
    %28 = vector.load %arg6[%c0_16, %c0_17] : memref<256x256xbf16, #tpu.memory_space<vmem>>, vector<256x256xbf16>
    tpu.vector_store %arg6[%c0_16, %c0_17], %27 {strides = array<i32>} : memref<256x256xbf16, #tpu.memory_space<vmem>>, vector<256x256xbf16>,
    return
  }
  func.func @transform_0(%arg0: i32) -> (i32, i32) {
    %c0_i32 = arith.constant 0 : i32
    %c0_i32_0 = arith.constant 0 : i32
    return %arg0, %c0_i32 : i32, i32
  }
  func.func @transform_1(%arg0: i32) -> (i32, i32) {
    %c0_i32 = arith.constant 0 : i32
    %c0_i32_0 = arith.constant 0 : i32
    %c0_i32_1 = arith.constant 0 : i32
    return %c0_i32, %c0_i32_0 : i32, i32
  }
  func.func @transform_2(%arg0: i32) -> (i32, i32) {
    %c0_i32 = arith.constant 0 : i32
    %c0_i32_0 = arith.constant 0 : i32
    %c0_i32_1 = arith.constant 0 : i32
    return %c0_i32, %c0_i32_0 : i32, i32
  }
  func.func @transform_3(%arg0: i32) -> (i32, i32) {
    %c0_i32 = arith.constant 0 : i32
    %c0_i32_0 = arith.constant 0 : i32
    %c0_i32_1 = arith.constant 0 : i32
    return %c0_i32, %c0_i32_0 : i32, i32
  }
  func.func @transform_4(%arg0: i32) -> (i32, i32) {
    %c0_i32 = arith.constant 0 : i32
    %c0_i32_0 = arith.constant 0 : i32
    %c0_i32_1 = arith.constant 0 : i32
    return %c0_i32, %c0_i32_0 : i32, i32
  }
  func.func @transform_5(%arg0: i32) -> (i32, i32) {
    %c0_i32 = arith.constant 0 : i32
    %c0_i32_0 = arith.constant 0 : i32
    return %arg0, %c0_i32 : i32, i32
  }
}

</mosaic_0001>

<llo_original>
// kernel: autoencoder_forward.1
$region0: #{autoencoder_forward.1}
  #allocation0 [shape = 'u32[]', space=smem, size = 0x4, offset = 0x4, fixed_abs, tag = 'smem constant byte address 0x4 - core index']
  #allocation1 [shape = 'u32[144,128]{1,0:T(1,128)}', space=vmem, size = 0x12000, scoped, tag = 'internal scratch']
  %s0 = inlined_call_operand.hbm [shape: f32[512,256], index: 0, kind: input, shape index: {}]
  %s1 = inlined_call_operand.hbm [shape: bf16[256,128], index: 1, kind: input, shape index: {}]
  %s2 = inlined_call_operand.vmem [shape: f32[1,128], index: 2, kind: input, shape index: {}]
  %s3 = inlined_call_operand.hbm [shape: bf16[128,256], index: 3, kind: input, shape index: {}]
  %s4 = inlined_call_operand.vmem [shape: f32[1,256], index: 4, kind: input, shape index: {}]
  %s5 = inlined_call_operand.hbm [shape: bf16[512,256], index: 5, kind: output, shape index: {}]
  %s6 = sld [smem:[#allocation0]]
  $region65: #{autoencoder_forward.1} parent=0
    _
  %s8 = ssub.s32 1, %s6
  %s9 = scalar_select 0, %s8, %s6
  $region1: #{autoencoder_forward.1} parent=0
    #allocation2 [shape = 'u8[524288]{0}', space=vmem, size = 0x80000, scoped, tag = 'input window, operand 0']
    #allocation3 [shape = 's32[2]{0}', space=sflag, size = 0x8, scoped, tag = 'scoped memory for autoencoder_forward.1']
    #allocation4 [shape = 's32[2]{0}', space=sflag, size = 0x8, scoped, tag = 'scoped memory for autoencoder_forward.1']
    #allocation5 [shape = 'u8[65536]{0}', space=vmem, size = 0x10000, scoped, tag = 'input window, operand 1, single buffered']
    #allocation6 [shape = 's32[1]{0}', space=sflag, size = 0x4, scoped, tag = 'scoped memory for autoencoder_forward.1']
    #allocation7 [shape = 'u8[65536]{0}', space=vmem, size = 0x10000, scoped, tag = 'input window, operand 3, single buffered']
    #allocation8 [shape = 'u8[262144]{0}', space=vmem, size = 0x40000, scoped, tag = 'output window, operand 0']
    %10 = vsyncpa [#allocation3], 0
    %s11 = scalar_lea.sflag [#allocation3], 1
    %12 = vsyncpa %s11, 0
    %13 = vsyncpa [#allocation6], 0
    %14 = vsyncpa [#allocation4], 0
    %s15 = scalar_lea.sflag [#allocation4], 1
    %16 = vsyncpa %s15, 0
    loop: start=0, step=1, limit=4
    $region2: #{autoencoder_forward.1} parent=1 // loop_pre_header
      _
    $region3: #{autoencoder_forward.1} parent=1 // loop_header
      %s18 = sphi 0, %s22
      %p19 = scmp.ge.s32.totalorder %s18, 4
      %s28 = sphi 0, %s30
      %s31 = sphi 0, %s28
      %s32 = sphi 0, %s31
      %s48 = sphi 0, %s32
      %s52 = sphi 0, %s52
      %s54 = sphi 0, %s52
      %s55 = sphi 0, %s54
      %s69 = sphi 0, %s55
      %s73 = sphi 0, %s73
      %s75 = sphi 0, %s73
      %s76 = sphi 0, %s75
      %s90 = sphi 0, %s76
      %s94 = sphi 0, %s94
      %s96 = sphi 0, %s94
      %s97 = sphi 0, %s96
      %s111 = sphi 0, %s97
      %s115 = sphi 0, %s115
      %s117 = sphi 0, %s115
      %s118 = sphi 0, %s117
      %s132 = sphi 0, %s118
      %s138 = sphi 0, %s140
      %s141 = sphi 0, %s138
      %s142 = sphi 0, %s141
      %s158 = sphi 0, %s142
    $region4: #{autoencoder_forward.1} parent=1 // loop_header_branch
      %21 = sbr.rel (%p19) target = $region8
    $region5: #{autoencoder_forward.1} parent=1 // loop_body
      %s23 = ssub.s32 %s18, 1
      %s24 = ssub.s32 %s18, 2
      %s25 = sadd.s32 %s18, 1
      %s26 = ssub.s32 %s18, %s25
      %p27 = scmp.eq.s32.totalorder %s26, 0
      %s29 = sadd.s32 %s28, 1
      %s30 = scalar_select %p27, %s28, %s29
      %p33 = pneg %p27
      %p34 = scmp.eq.s32.totalorder %s18, 1
      %p35 = por %p33, %p34
      %p36 = scmp.ne.s32.totalorder %s28, %s31
      %p37 = scmp.eq.s32.totalorder %s18, 0
      %p38 = por %p36, %p37
      %p39 = scmp.ne.s32.totalorder %s28, %s31
      %p40 = scmp.eq.s32.totalorder %s23, 1
      %p41 = por %p39, %p40
      %p42 = scmp.ne.s32.totalorder %s31, %s32
      %p43 = scmp.eq.s32.totalorder %s23, 0
      %p44 = por %p42, %p43
      %p45 = scmp.ne.s32.totalorder %s31, %s32
      %p46 = scmp.eq.s32.totalorder %s24, 1
      %p47 = por %p45, %p46
      %p49 = scmp.ne.s32.totalorder %s32, %s48
      %p50 = scmp.eq.s32.totalorder %s24, 0
      %p51 = por %p49, %p50
      %s53 = sadd.s32 %s52, 1
      %p56 = scmp.eq.s32.totalorder %s18, 1
      %p57 = scmp.ne.s32.totalorder %s52, %s54
      %p58 = scmp.eq.s32.totalorder %s18, 0
      %p59 = por %p57, %p58
      %p60 = scmp.ne.s32.totalorder %s52, %s54
      %p61 = scmp.eq.s32.totalorder %s23, 1
      %p62 = por %p60, %p61
      %p63 = scmp.ne.s32.totalorder %s54, %s55
      %p64 = scmp.eq.s32.totalorder %s23, 0
      %p65 = por %p63, %p64
      %p66 = scmp.ne.s32.totalorder %s54, %s55
      %p67 = scmp.eq.s32.totalorder %s24, 1
      %p68 = por %p66, %p67
      %p70 = scmp.ne.s32.totalorder %s55, %s69
      %p71 = scmp.eq.s32.totalorder %s24, 0
      %p72 = por %p70, %p71
      %s74 = sadd.s32 %s73, 1
      %p77 = scmp.eq.s32.totalorder %s18, 1
      %p78 = scmp.ne.s32.totalorder %s73, %s75
      %p79 = scmp.eq.s32.totalorder %s18, 0
      %p80 = por %p78, %p79
      %p81 = scmp.ne.s32.totalorder %s73, %s75
      %p82 = scmp.eq.s32.totalorder %s23, 1
      %p83 = por %p81, %p82
      %p84 = scmp.ne.s32.totalorder %s75, %s76
      %p85 = scmp.eq.s32.totalorder %s23, 0
      %p86 = por %p84, %p85
      %p87 = scmp.ne.s32.totalorder %s75, %s76
      %p88 = scmp.eq.s32.totalorder %s24, 1
      %p89 = por %p87, %p88
      %p91 = scmp.ne.s32.totalorder %s76, %s90
      %p92 = scmp.eq.s32.totalorder %s24, 0
      %p93 = por %p91, %p92
      %s95 = sadd.s32 %s94, 1
      %p98 = scmp.eq.s32.totalorder %s18, 1
      %p99 = scmp.ne.s32.totalorder %s94, %s96
      %p100 = scmp.eq.s32.totalorder %s18, 0
      %p101 = por %p99, %p100
      %p102 = scmp.ne.s32.totalorder %s94, %s96
      %p103 = scmp.eq.s32.totalorder %s23, 1
      %p104 = por %p102, %p103
      %p105 = scmp.ne.s32.totalorder %s96, %s97
      %p106 = scmp.eq.s32.totalorder %s23, 0
      %p107 = por %p105, %p106
      %p108 = scmp.ne.s32.totalorder %s96, %s97
      %p109 = scmp.eq.s32.totalorder %s24, 1
      %p110 = por %p108, %p109
      %p112 = scmp.ne.s32.totalorder %s97, %s111
      %p113 = scmp.eq.s32.totalorder %s24, 0
      %p114 = por %p112, %p113
      %s116 = sadd.s32 %s115, 1
      %p119 = scmp.eq.s32.totalorder %s18, 1
      %p120 = scmp.ne.s32.totalorder %s115, %s117
      %p121 = scmp.eq.s32.totalorder %s18, 0
      %p122 = por %p120, %p121
      %p123 = scmp.ne.s32.totalorder %s115, %s117
      %p124 = scmp.eq.s32.totalorder %s23, 1
      %p125 = por %p123, %p124
      %p126 = scmp.ne.s32.totalorder %s117, %s118
      %p127 = scmp.eq.s32.totalorder %s23, 0
      %p128 = por %p126, %p127
      %p129 = scmp.ne.s32.totalorder %s117, %s118
      %p130 = scmp.eq.s32.totalorder %s24, 1
      %p131 = por %p129, %p130
      %p133 = scmp.ne.s32.totalorder %s118, %s132
      %p134 = scmp.eq.s32.totalorder %s24, 0
      %p135 = por %p133, %p134
      %s136 = ssub.s32 %s18, %s25
      %p137 = scmp.eq.s32.totalorder %s136, 0
      %s139 = sadd.s32 %s138, 1
      %s140 = scalar_select %p137, %s138, %s139
      %p143 = pneg %p137
      %p144 = scmp.eq.s32.totalorder %s18, 1
      %p145 = por %p143, %p144
      %p146 = scmp.ne.s32.totalorder %s138, %s141
      %p147 = scmp.eq.s32.totalorder %s18, 0
      %p148 = por %p146, %p147
      %p149 = scmp.ne.s32.totalorder %s138, %s141
      %p150 = scmp.eq.s32.totalorder %s23, 1
      %p151 = por %p149, %p150
      %p152 = scmp.ne.s32.totalorder %s141, %s142
      %p153 = scmp.eq.s32.totalorder %s23, 0
      %p154 = por %p152, %p153
      %p155 = scmp.ne.s32.totalorder %s141, %s142
      %p156 = scmp.eq.s32.totalorder %s24, 1
      %p157 = por %p155, %p156
      %p159 = scmp.ne.s32.totalorder %s142, %s158
      %p160 = scmp.eq.s32.totalorder %s24, 0
      %p161 = por %p159, %p160
      %p162 = scmp.le.s32.totalorder 1, %s18
      %p163 = scmp.lt.s32.totalorder %s18, 3
      %p164 = pnand %p162, %p163
      %p165 = pneg %p164
      // Predicated region
      $region9: #{autoencoder_forward.1} parent=5 // pred_check
        _
      $region10: #{autoencoder_forward.1} parent=5 // pred_check_branch
        %167 = sbr.rel (%p164) target = $region12
      $region11: #{autoencoder_forward.1} parent=5 // pred_region
        %s168 = ssub.s32 %s18, 1
        // Predicated region
        $region13: #{autoencoder_forward.1} parent=11 // pred_check
          %p169 = pneg %p65
        $region14: #{autoencoder_forward.1} parent=11 // pred_check_branch
          %171 = sbr.rel (%p169) target = $region16
        $region15: #{autoencoder_forward.1} parent=11 // pred_region
          %s173 = ssub.s32 2048, 2048
          %174 = vsyncadd [#allocation6], %s173
          %s175 = sshll.u32 [#allocation5], 4
          %s176 = int_to_ptr.vmem [resolvable:$true] %s175
          %181 = dma.hbm_to_vmem [thread:$0]  %s1, 2048, %s176, [#allocation6], 64, 64, 4
        $region16: #{autoencoder_forward.1} parent=11 // pred_fallthru
          _
        // Predicated region
        $region17: #{autoencoder_forward.1} parent=11 // pred_check
          %p182 = pneg %p86
        $region18: #{autoencoder_forward.1} parent=11 // pred_check_branch
          %184 = sbr.rel (%p182) target = $region20
        $region19: #{autoencoder_forward.1} parent=11 // pred_region
          _
        $region20: #{autoencoder_forward.1} parent=11 // pred_fallthru
          _
        // Predicated region
        $region21: #{autoencoder_forward.1} parent=11 // pred_check
          %p185 = pneg %p107
        $region22: #{autoencoder_forward.1} parent=11 // pred_check_branch
          %187 = sbr.rel (%p185) target = $region24
        $region23: #{autoencoder_forward.1} parent=11 // pred_region
          %s189 = ssub.s32 2048, 2048
          %190 = vsyncadd [#allocation6], %s189
          %s191 = sshll.u32 [#allocation7], 4
          %s192 = int_to_ptr.vmem [resolvable:$true] %s191
          %197 = dma.hbm_to_vmem [thread:$0]  %s3, 2048, %s192, [#allocation6], 128, 128, 8
        $region24: #{autoencoder_forward.1} parent=11 // pred_fallthru
          _
        // Predicated region
        $region25: #{autoencoder_forward.1} parent=11 // pred_check
          %p198 = pneg %p128
        $region26: #{autoencoder_forward.1} parent=11 // pred_check_branch
          %200 = sbr.rel (%p198) target = $region28
        $region27: #{autoencoder_forward.1} parent=11 // pred_region
          _
        $region28: #{autoencoder_forward.1} parent=11 // pred_fallthru
          _
      $region12: #{autoencoder_forward.1} parent=5 // pred_fallthru
        _
      %p201 = scmp.lt.s32.totalorder %s18, 2
      // Predicated region
      $region29: #{autoencoder_forward.1} parent=5 // pred_check
        %p202 = pneg %p201
      $region30: #{autoencoder_forward.1} parent=5 // pred_check_branch
        %204 = sbr.rel (%p202) target = $region32
      $region31: #{autoencoder_forward.1} parent=5 // pred_region
        // Predicated region
        $region33: #{autoencoder_forward.1} parent=31 // pred_check
          %p205 = pneg %p38
        $region34: #{autoencoder_forward.1} parent=31 // pred_check_branch
          %207 = sbr.rel (%p205) target = $region36
        $region35: #{autoencoder_forward.1} parent=31 // pred_region
          %s208 = sand.u32 %s28, 1
          %s209 = scalar_lea.sflag [#allocation3], %s208
          %s210 = sand.u32 %s28, 1
          %s211 = smul.addr %s210, 512
          %s212 = scalar_lea.vmem [#allocation2], %s211
          %s213 = smul.u32 32, %s18
          %s215 = ssub.s32 8192, 8192
          %216 = vsyncadd %s209, %s215
          %s217 = smul.addr %s213, 2
          %s218 = smul.addr %s217, 128
          %s219 = scalar_lea.hbm %s0, %s218
          %s220 = sshll.u32 %s212, 4
          %s221 = int_to_ptr.vmem [resolvable:$true] %s220
          %226 = dma.hbm_to_vmem [thread:$0]  %s219, 8192, %s221, %s209, 256, 256, 16
        $region36: #{autoencoder_forward.1} parent=31 // pred_fallthru
          _
      $region32: #{autoencoder_forward.1} parent=5 // pred_fallthru
        _
      %p227 = scmp.le.s32.totalorder 1, %s18
      %p228 = scmp.lt.s32.totalorder %s18, 3
      %p229 = pnand %p227, %p228
      %p230 = pneg %p229
      // Predicated region
      $region37: #{autoencoder_forward.1} parent=5 // pred_check
        _
      $region38: #{autoencoder_forward.1} parent=5 // pred_check_branch
        %232 = sbr.rel (%p229) target = $region40
      $region39: #{autoencoder_forward.1} parent=5 // pred_region
        %s233 = ssub.s32 %s18, 1
        %s234 = sand.u32 %s31, 1
        %s235 = scalar_lea.sflag [#allocation3], %s234
        %s236 = sand.u32 %s31, 1
        %s237 = smul.addr %s236, 512
        %s238 = scalar_lea.vmem [#allocation2], %s237
        // Predicated region
        $region41: #{autoencoder_forward.1} parent=39 // pred_check
          %p239 = pneg %p44
        $region42: #{autoencoder_forward.1} parent=39 // pred_check_branch
          %241 = sbr.rel (%p239) target = $region44
        $region43: #{autoencoder_forward.1} parent=39 // pred_region
          %242 = dma.done %s235, 8192
        $region44: #{autoencoder_forward.1} parent=39 // pred_fallthru
          _
        // Predicated region
        $region45: #{autoencoder_forward.1} parent=39 // pred_check
          %p243 = pneg %p65
        $region46: #{autoencoder_forward.1} parent=39 // pred_check_branch
          %245 = sbr.rel (%p243) target = $region48
        $region47: #{autoencoder_forward.1} parent=39 // pred_region
          %246 = dma.done [#allocation6], 2048
        $region48: #{autoencoder_forward.1} parent=39 // pred_fallthru
          _
        // Predicated region
        $region49: #{autoencoder_forward.1} parent=39 // pred_check
          %p247 = pneg %p107
        $region50: #{autoencoder_forward.1} parent=39 // pred_check_branch
          %249 = sbr.rel (%p247) target = $region52
        $region51: #{autoencoder_forward.1} parent=39 // pred_region
          %250 = dma.done [#allocation6], 2048
        $region52: #{autoencoder_forward.1} parent=39 // pred_fallthru
          _
        %s251 = sand.u32 %s31, 1
        %s252 = scalar_lea.sflag [#allocation3], %s251
        %s253 = sand.u32 %s31, 1
        %s254 = smul.addr %s253, 512
        %s255 = scalar_lea.vmem [#allocation2], %s254
        %p256 = pneg %p44
        %p257 = pneg %p41
        %p258 = pneg %p65
        %p259 = pneg %p62
        %p260 = pneg %p86
        %p261 = pneg %p83
        %p262 = pneg %p107
        %p263 = pneg %p104
        %p264 = pneg %p128
        %p265 = pneg %p125
        %p266 = pneg %p154
        %p267 = pneg %p151
        %s268 = sand.u32 %s141, 1
        %s269 = scalar_lea.sflag [#allocation4], %s268
        %s270 = sand.u32 %s141, 1
        %s271 = smul.addr %s270, 256
        %s272 = scalar_lea.vmem [#allocation8], %s271
        %s273 = smul.u32 32, %s23
        %s274 = smul.u32 32, %s23
        %v276 = vld [vmem:[%s238] sm:$0xff]
        %v277 = vld [vmem:[%s238 + $0x8] sm:$0xff]
        %v278 = vld [vmem:[%s238 + $0x10] sm:$0xff]
        %v279 = vld [vmem:[%s238 + $0x18] sm:$0xff]
        %v280 = vld [vmem:[%s238 + $0x20] sm:$0xff]
        %v281 = vld [vmem:[%s238 + $0x28] sm:$0xff]
        %v282 = vld [vmem:[%s238 + $0x30] sm:$0xff]
        %v283 = vld [vmem:[%s238 + $0x38] sm:$0xff]
        %v284 = vld [vmem:[%s238 + $0x40] sm:$0xff]
        %v285 = vld [vmem:[%s238 + $0x48] sm:$0xff]
        %v286 = vld [vmem:[%s238 + $0x50] sm:$0xff]
        %v287 = vld [vmem:[%s238 + $0x58] sm:$0xff]
        %v288 = vld [vmem:[%s238 + $0x60] sm:$0xff]
        %v289 = vld [vmem:[%s238 + $0x68] sm:$0xff]
        %v290 = vld [vmem:[%s238 + $0x70] sm:$0xff]
        %v291 = vld [vmem:[%s238 + $0x78] sm:$0xff]
        %v292 = vld [vmem:[%s238 + $0x80] sm:$0xff]
        %v293 = vld [vmem:[%s238 + $0x88] sm:$0xff]
        %v294 = vld [vmem:[%s238 + $0x90] sm:$0xff]
        %v295 = vld [vmem:[%s238 + $0x98] sm:$0xff]
        %v296 = vld [vmem:[%s238 + $0xa0] sm:$0xff]
        %v297 = vld [vmem:[%s238 + $0xa8] sm:$0xff]
        %v298 = vld [vmem:[%s238 + $0xb0] sm:$0xff]
        %v299 = vld [vmem:[%s238 + $0xb8] sm:$0xff]
        %v300 = vld [vmem:[%s238 + $0xc0] sm:$0xff]
        %v301 = vld [vmem:[%s238 + $0xc8] sm:$0xff]
        %v302 = vld [vmem:[%s238 + $0xd0] sm:$0xff]
        %v303 = vld [vmem:[%s238 + $0xd8] sm:$0xff]
        %v304 = vld [vmem:[%s238 + $0xe0] sm:$0xff]
        %v305 = vld [vmem:[%s238 + $0xe8] sm:$0xff]
        %v306 = vld [vmem:[%s238 + $0xf0] sm:$0xff]
        %v307 = vld [vmem:[%s238 + $0xf8] sm:$0xff]
        %v308 = vld [vmem:[%s238 + $0x100] sm:$0xff]
        %v309 = vld [vmem:[%s238 + $0x108] sm:$0xff]
        %v310 = vld [vmem:[%s238 + $0x110] sm:$0xff]
        %v311 = vld [vmem:[%s238 + $0x118] sm:$0xff]
        %v312 = vld [vmem:[%s238 + $0x120] sm:$0xff]
        %v313 = vld [vmem:[%s238 + $0x128] sm:$0xff]
        %v314 = vld [vmem:[%s238 + $0x130] sm:$0xff]
        %v315 = vld [vmem:[%s238 + $0x138] sm:$0xff]
        %v316 = vld [vmem:[%s238 + $0x140] sm:$0xff]
        %v317 = vld [vmem:[%s238 + $0x148] sm:$0xff]
        %v318 = vld [vmem:[%s238 + $0x150] sm:$0xff]
        %v319 = vld [vmem:[%s238 + $0x158] sm:$0xff]
        %v320 = vld [vmem:[%s238 + $0x160] sm:$0xff]
        %v321 = vld [vmem:[%s238 + $0x168] sm:$0xff]
        %v322 = vld [vmem:[%s238 + $0x170] sm:$0xff]
        %v323 = vld [vmem:[%s238 + $0x178] sm:$0xff]
        %v324 = vld [vmem:[%s238 + $0x180] sm:$0xff]
        %v325 = vld [vmem:[%s238 + $0x188] sm:$0xff]
        %v326 = vld [vmem:[%s238 + $0x190] sm:$0xff]
        %v327 = vld [vmem:[%s238 + $0x198] sm:$0xff]
        %v328 = vld [vmem:[%s238 + $0x1a0] sm:$0xff]
        %v329 = vld [vmem:[%s238 + $0x1a8] sm:$0xff]
        %v330 = vld [vmem:[%s238 + $0x1b0] sm:$0xff]
        %v331 = vld [vmem:[%s238 + $0x1b8] sm:$0xff]
        %v332 = vld [vmem:[%s238 + $0x1c0] sm:$0xff]
        %v333 = vld [vmem:[%s238 + $0x1c8] sm:$0xff]
        %v334 = vld [vmem:[%s238 + $0x1d0] sm:$0xff]
        %v335 = vld [vmem:[%s238 + $0x1d8] sm:$0xff]
        %v336 = vld [vmem:[%s238 + $0x1e0] sm:$0xff]
        %v337 = vld [vmem:[%s238 + $0x1e8] sm:$0xff]
        %v338 = vld [vmem:[%s238 + $0x1f0] sm:$0xff]
        %v339 = vld [vmem:[%s238 + $0x1f8] sm:$0xff]
        %v340 = vpack.c.bf16 %v278, %v276
        %v341 = vpack.c.bf16 %v279, %v277
        %v342 = vpack.c.bf16 %v282, %v280
        %v343 = vpack.c.bf16 %v283, %v281
        %v344 = vpack.c.bf16 %v286, %v284
        %v345 = vpack.c.bf16 %v287, %v285
        %v346 = vpack.c.bf16 %v290, %v288
        %v347 = vpack.c.bf16 %v291, %v289
        %v348 = vpack.c.bf16 %v294, %v292
        %v349 = vpack.c.bf16 %v295, %v293
        %v350 = vpack.c.bf16 %v298, %v296
        %v351 = vpack.c.bf16 %v299, %v297
        %v352 = vpack.c.bf16 %v302, %v300
        %v353 = vpack.c.bf16 %v303, %v301
        %v354 = vpack.c.bf16 %v306, %v304
        %v355 = vpack.c.bf16 %v307, %v305
        %v356 = vpack.c.bf16 %v310, %v308
        %v357 = vpack.c.bf16 %v311, %v309
        %v358 = vpack.c.bf16 %v314, %v312
        %v359 = vpack.c.bf16 %v315, %v313
        %v360 = vpack.c.bf16 %v318, %v316
        %v361 = vpack.c.bf16 %v319, %v317
        %v362 = vpack.c.bf16 %v322, %v320
        %v363 = vpack.c.bf16 %v323, %v321
        %v364 = vpack.c.bf16 %v326, %v324
        %v365 = vpack.c.bf16 %v327, %v325
        %v366 = vpack.c.bf16 %v330, %v328
        %v367 = vpack.c.bf16 %v331, %v329
        %v368 = vpack.c.bf16 %v334, %v332
        %v369 = vpack.c.bf16 %v335, %v333
        %v370 = vpack.c.bf16 %v338, %v336
        %v371 = vpack.c.bf16 %v339, %v337
        %v372 = vld [vmem:[#allocation5] sm:$0xf]
        %v373 = vld [vmem:[#allocation5 + $0x4] sm:$0xf]
        %v374 = vld [vmem:[#allocation5 + $0x8] sm:$0xf]
        %v375 = vld [vmem:[#allocation5 + $0xc] sm:$0xf]
        %v376 = vld [vmem:[#allocation5 + $0x10] sm:$0xf]
        %v377 = vld [vmem:[#allocation5 + $0x14] sm:$0xf]
        %v378 = vld [vmem:[#allocation5 + $0x18] sm:$0xf]
        %v379 = vld [vmem:[#allocation5 + $0x1c] sm:$0xf]
        %v380 = vld [vmem:[#allocation5 + $0x20] sm:$0xf]
        %v381 = vld [vmem:[#allocation5 + $0x24] sm:$0xf]
        %v382 = vld [vmem:[#allocation5 + $0x28] sm:$0xf]
        %v383 = vld [vmem:[#allocation5 + $0x2c] sm:$0xf]
        %v384 = vld [vmem:[#allocation5 + $0x30] sm:$0xf]
        %v385 = vld [vmem:[#allocation5 + $0x34] sm:$0xf]
        %v386 = vld [vmem:[#allocation5 + $0x38] sm:$0xf]
        %v387 = vld [vmem:[#allocation5 + $0x3c] sm:$0xf]
        %v388 = vld [vmem:[#allocation5 + $0x40] sm:$0xf]
        %v389 = vld [vmem:[#allocation5 + $0x44] sm:$0xf]
        %v390 = vld [vmem:[#allocation5 + $0x48] sm:$0xf]
        %v391 = vld [vmem:[#allocation5 + $0x4c] sm:$0xf]
        %v392 = vld [vmem:[#allocation5 + $0x50] sm:$0xf]
        %v393 = vld [vmem:[#allocation5 + $0x54] sm:$0xf]
        %v394 = vld [vmem:[#allocation5 + $0x58] sm:$0xf]
        %v395 = vld [vmem:[#allocation5 + $0x5c] sm:$0xf]
        %v396 = vld [vmem:[#allocation5 + $0x60] sm:$0xf]
        %v397 = vld [vmem:[#allocation5 + $0x64] sm:$0xf]
        %v398 = vld [vmem:[#allocation5 + $0x68] sm:$0xf]
        %v399 = vld [vmem:[#allocation5 + $0x6c] sm:$0xf]
        %v400 = vld [vmem:[#allocation5 + $0x70] sm:$0xf]
        %v401 = vld [vmem:[#allocation5 + $0x74] sm:$0xf]
        %v402 = vld [vmem:[#allocation5 + $0x78] sm:$0xf]
        %v403 = vld [vmem:[#allocation5 + $0x7c] sm:$0xf]
        %v404 = vld [vmem:[%s2] sm:$0x1]
        %v406 = vlaneseq
        %v407 = vshrl.u32 %v406, 7
        %v408 = vsub.s32 0, %v407
        %v409 = vrot.slane %v404, %v408
        %v443 = vunpack.c.l.b16 %v372
        %v444 = vunpack.c.l.b16 %v373
        %v445 = vunpack.c.l.b16 %v374
        %v446 = vunpack.c.l.b16 %v375
        %v447 = vunpack.c.l.b16 %v376
        %v448 = vunpack.c.l.b16 %v377
        %v449 = vunpack.c.l.b16 %v378
        %v450 = vunpack.c.l.b16 %v379
        %v451 = vunpack.c.l.b16 %v380
        %v452 = vunpack.c.l.b16 %v381
        %v453 = vunpack.c.l.b16 %v382
        %v454 = vunpack.c.l.b16 %v383
        %v455 = vunpack.c.l.b16 %v384
        %v456 = vunpack.c.l.b16 %v385
        %v457 = vunpack.c.l.b16 %v386
        %v458 = vunpack.c.l.b16 %v387
        %v459 = vunpack.c.l.b16 %v388
        %v460 = vunpack.c.l.b16 %v389
        %v461 = vunpack.c.l.b16 %v390
        %v462 = vunpack.c.l.b16 %v391
        %v463 = vunpack.c.l.b16 %v392
        %v464 = vunpack.c.l.b16 %v393
        %v465 = vunpack.c.l.b16 %v394
        %v466 = vunpack.c.l.b16 %v395
        %v467 = vunpack.c.l.b16 %v396
        %v468 = vunpack.c.l.b16 %v397
        %v469 = vunpack.c.l.b16 %v398
        %v470 = vunpack.c.l.b16 %v399
        %v471 = vunpack.c.l.b16 %v400
        %v472 = vunpack.c.l.b16 %v401
        %v473 = vunpack.c.l.b16 %v402
        %v474 = vunpack.c.l.b16 %v403
        %v475 = vpack.c.b16 %v444, %v443
        %v476 = vpack.c.b16 %v446, %v445
        %v477 = vpack.c.b16 %v448, %v447
        %v478 = vpack.c.b16 %v450, %v449
        %v479 = vpack.c.b16 %v452, %v451
        %v480 = vpack.c.b16 %v454, %v453
        %v481 = vpack.c.b16 %v456, %v455
        %v482 = vpack.c.b16 %v458, %v457
        %v483 = vpack.c.b16 %v460, %v459
        %v484 = vpack.c.b16 %v462, %v461
        %v485 = vpack.c.b16 %v464, %v463
        %v486 = vpack.c.b16 %v466, %v465
        %v487 = vpack.c.b16 %v468, %v467
        %v488 = vpack.c.b16 %v470, %v469
        %v489 = vpack.c.b16 %v472, %v471
        %v490 = vpack.c.b16 %v474, %v473
        %507 = vmatprep.subr.bf16.mxu0 0
        %508 = vmatpush1.bf16.msra.mxu0 %v475
        %509 = vmatprep.subr.bf16.mxu0 0
        %510 = vmatpush1.bf16.msra.mxu0 %v476
        %511 = vmatprep.subr.bf16.mxu0 0
        %512 = vmatpush1.bf16.msra.mxu0 %v477
        %513 = vmatprep.subr.bf16.mxu0 0
        %514 = vmatpush1.bf16.msra.mxu0 %v478
        %515 = vmatprep.subr.bf16.mxu0 0
        %516 = vmatpush1.bf16.msra.mxu0 %v479
        %517 = vmatprep.subr.bf16.mxu0 0
        %518 = vmatpush1.bf16.msra.mxu0 %v480
        %519 = vmatprep.subr.bf16.mxu0 0
        %520 = vmatpush1.bf16.msra.mxu0 %v481
        %521 = vmatprep.subr.bf16.mxu0 0
        %522 = vmatpush1.bf16.msra.mxu0 %v482
        %523 = vmatprep.subr.bf16.mxu0 0
        %524 = vmatpush1.bf16.msra.mxu0 %v483
        %525 = vmatprep.subr.bf16.mxu0 0
        %526 = vmatpush1.bf16.msra.mxu0 %v484
        %527 = vmatprep.subr.bf16.mxu0 0
        %528 = vmatpush1.bf16.msra.mxu0 %v485
        %529 = vmatprep.subr.bf16.mxu0 0
        %530 = vmatpush1.bf16.msra.mxu0 %v486
        %531 = vmatprep.subr.bf16.mxu0 0
        %532 = vmatpush1.bf16.msra.mxu0 %v487
        %533 = vmatprep.subr.bf16.mxu0 0
        %534 = vmatpush1.bf16.msra.mxu0 %v488
        %535 = vmatprep.subr.bf16.mxu0 0
        %536 = vmatpush1.bf16.msra.mxu0 %v489
        %537 = vmatprep.subr.bf16.mxu0 0
        %538 = vmatpush1.bf16.msra.mxu0 %v490
        %539 = vmatprep.mubr.bf16.mxu0 %v341
        %540 = vmatmul.mubr.bf16.gmra.mrb[0].mxu0 %v340
        %v541 = vpop.f32.mrb[0].mxu0
        %v542 = vadd.f32 %v409, %v541
        %v543 = vpop.f32.mrb[0].mxu0
        %v544 = vpop.f32.mrb[0].mxu0
        %v545 = vadd.f32 %v409, %v544
        %v546 = vpop.f32.mrb[0].mxu0
        %547 = vmatprep.mubr.bf16.mxu0 %v343
        %548 = vmatmul.mubr.bf16.gmra.mrb[0].mxu0 %v342
        %v549 = vpop.f32.mrb[0].mxu0
        %v550 = vadd.f32 %v409, %v549
        %v551 = vpop.f32.mrb[0].mxu0
        %v552 = vpop.f32.mrb[0].mxu0
        %v553 = vadd.f32 %v409, %v552
        %v554 = vpop.f32.mrb[0].mxu0
        %555 = vmatprep.mubr.bf16.mxu0 %v345
        %556 = vmatmul.mubr.bf16.gmra.mrb[0].mxu0 %v344
        %v557 = vpop.f32.mrb[0].mxu0
        %v558 = vadd.f32 %v409, %v557
        %v559 = vpop.f32.mrb[0].mxu0
        %v560 = vpop.f32.mrb[0].mxu0
        %v561 = vadd.f32 %v409, %v560
        %v562 = vpop.f32.mrb[0].mxu0
        %563 = vmatprep.mubr.bf16.mxu0 %v347
        %564 = vmatmul.mubr.bf16.gmra.mrb[0].mxu0 %v346
        %v565 = vpop.f32.mrb[0].mxu0
        %v566 = vadd.f32 %v409, %v565
        %v567 = vpop.f32.mrb[0].mxu0
        %v568 = vpop.f32.mrb[0].mxu0
        %v569 = vadd.f32 %v409, %v568
        %v570 = vpop.f32.mrb[0].mxu0
        %571 = vmatprep.mubr.bf16.mxu0 %v349
        %572 = vmatmul.mubr.bf16.gmra.mrb[0].mxu0 %v348
        %v573 = vpop.f32.mrb[0].mxu0
        %v574 = vadd.f32 %v409, %v573
        %v575 = vpop.f32.mrb[0].mxu0
        %v576 = vpop.f32.mrb[0].mxu0
        %v577 = vadd.f32 %v409, %v576
        %v578 = vpop.f32.mrb[0].mxu0
        %579 = vmatprep.mubr.bf16.mxu0 %v351
        %580 = vmatmul.mubr.bf16.gmra.mrb[0].mxu0 %v350
        %v581 = vpop.f32.mrb[0].mxu0
        %v582 = vadd.f32 %v409, %v581
        %v583 = vpop.f32.mrb[0].mxu0
        %v584 = vpop.f32.mrb[0].mxu0
        %v585 = vadd.f32 %v409, %v584
        %v586 = vpop.f32.mrb[0].mxu0
        %587 = vmatprep.mubr.bf16.mxu0 %v353
        %588 = vmatmul.mubr.bf16.gmra.mrb[0].mxu0 %v352
        %v589 = vpop.f32.mrb[0].mxu0
        %v590 = vadd.f32 %v409, %v589
        %v591 = vpop.f32.mrb[0].mxu0
        %v592 = vpop.f32.mrb[0].mxu0
        %v593 = vadd.f32 %v409, %v592
        %v594 = vpop.f32.mrb[0].mxu0
        %595 = vmatprep.mubr.bf16.mxu0 %v355
        %596 = vmatmul.mubr.bf16.gmra.mrb[0].mxu0 %v354
        %v597 = vpop.f32.mrb[0].mxu0
        %v598 = vadd.f32 %v409, %v597
        %v599 = vpop.f32.mrb[0].mxu0
        %v600 = vpop.f32.mrb[0].mxu0
        %v601 = vadd.f32 %v409, %v600
        %v602 = vpop.f32.mrb[0].mxu0
        %603 = vmatprep.mubr.bf16.mxu0 %v357
        %604 = vmatmul.mubr.bf16.gmra.mrb[0].mxu0 %v356
        %v605 = vpop.f32.mrb[0].mxu0
        %v606 = vadd.f32 %v409, %v605
        %v607 = vpop.f32.mrb[0].mxu0
        %v608 = vpop.f32.mrb[0].mxu0
        %v609 = vadd.f32 %v409, %v608
        %v610 = vpop.f32.mrb[0].mxu0
        %611 = vmatprep.mubr.bf16.mxu0 %v359
        %612 = vmatmul.mubr.bf16.gmra.mrb[0].mxu0 %v358
        %v613 = vpop.f32.mrb[0].mxu0
        %v614 = vadd.f32 %v409, %v613
        %v615 = vpop.f32.mrb[0].mxu0
        %v616 = vpop.f32.mrb[0].mxu0
        %v617 = vadd.f32 %v409, %v616
        %v618 = vpop.f32.mrb[0].mxu0
        %619 = vmatprep.mubr.bf16.mxu0 %v361
        %620 = vmatmul.mubr.bf16.gmra.mrb[0].mxu0 %v360
        %v621 = vpop.f32.mrb[0].mxu0
        %v622 = vadd.f32 %v409, %v621
        %v623 = vpop.f32.mrb[0].mxu0
        %v624 = vpop.f32.mrb[0].mxu0
        %v625 = vadd.f32 %v409, %v624
        %v626 = vpop.f32.mrb[0].mxu0
        %627 = vmatprep.mubr.bf16.mxu0 %v363
        %628 = vmatmul.mubr.bf16.gmra.mrb[0].mxu0 %v362
        %v629 = vpop.f32.mrb[0].mxu0
        %v630 = vadd.f32 %v409, %v629
        %v631 = vpop.f32.mrb[0].mxu0
        %v632 = vpop.f32.mrb[0].mxu0
        %v633 = vadd.f32 %v409, %v632
        %v634 = vpop.f32.mrb[0].mxu0
        %635 = vmatprep.mubr.bf16.mxu0 %v365
        %636 = vmatmul.mubr.bf16.gmra.mrb[0].mxu0 %v364
        %v637 = vpop.f32.mrb[0].mxu0
        %v638 = vadd.f32 %v409, %v637
        %v639 = vpop.f32.mrb[0].mxu0
        %v640 = vpop.f32.mrb[0].mxu0
        %v641 = vadd.f32 %v409, %v640
        %v642 = vpop.f32.mrb[0].mxu0
        %643 = vmatprep.mubr.bf16.mxu0 %v367
        %644 = vmatmul.mubr.bf16.gmra.mrb[0].mxu0 %v366
        %v645 = vpop.f32.mrb[0].mxu0
        %v646 = vadd.f32 %v409, %v645
        %v647 = vpop.f32.mrb[0].mxu0
        %v648 = vpop.f32.mrb[0].mxu0
        %v649 = vadd.f32 %v409, %v648
        %v650 = vpop.f32.mrb[0].mxu0
        %651 = vmatprep.mubr.bf16.mxu0 %v369
        %652 = vmatmul.mubr.bf16.gmra.mrb[0].mxu0 %v368
        %v653 = vpop.f32.mrb[0].mxu0
        %v654 = vadd.f32 %v409, %v653
        %v655 = vpop.f32.mrb[0].mxu0
        %v656 = vpop.f32.mrb[0].mxu0
        %v657 = vadd.f32 %v409, %v656
        %v658 = vpop.f32.mrb[0].mxu0
        %659 = vmatprep.mubr.bf16.mxu0 %v371
        %660 = vmatmul.mubr.bf16.gmra.mrb[0].mxu0 %v370
        %v661 = vpop.f32.mrb[0].mxu0
        %v662 = vadd.f32 %v409, %v661
        %v663 = vpop.f32.mrb[0].mxu0
        %v664 = vpop.f32.mrb[0].mxu0
        %v665 = vadd.f32 %v409, %v664
        %v666 = vpop.f32.mrb[0].mxu0
        %667 = vdwg.mxu0
        %v668 = vmul.f32 %v542, 0.5
        %v669 = vmul.f32 %v545, 0.5
        %v670 = vmul.f32 %v550, 0.5
        %v671 = vmul.f32 %v553, 0.5
        %v672 = vmul.f32 %v558, 0.5
        %v673 = vmul.f32 %v561, 0.5
        %v674 = vmul.f32 %v566, 0.5
        %v675 = vmul.f32 %v569, 0.5
        %v676 = vmul.f32 %v574, 0.5
        %v677 = vmul.f32 %v577, 0.5
        %v678 = vmul.f32 %v582, 0.5
        %v679 = vmul.f32 %v585, 0.5
        %v680 = vmul.f32 %v590, 0.5
        %v681 = vmul.f32 %v593, 0.5
        %v682 = vmul.f32 %v598, 0.5
        %v683 = vmul.f32 %v601, 0.5
        %v684 = vmul.f32 %v606, 0.5
        %v685 = vmul.f32 %v609, 0.5
        %v686 = vmul.f32 %v614, 0.5
        %v687 = vmul.f32 %v617, 0.5
        %v688 = vmul.f32 %v622, 0.5
        %v689 = vmul.f32 %v625, 0.5
        %v690 = vmul.f32 %v630, 0.5
        %v691 = vmul.f32 %v633, 0.5
        %v692 = vmul.f32 %v638, 0.5
        %v693 = vmul.f32 %v641, 0.5
        %v694 = vmul.f32 %v646, 0.5
        %v695 = vmul.f32 %v649, 0.5
        %v696 = vmul.f32 %v654, 0.5
        %v697 = vmul.f32 %v657, 0.5
        %v698 = vmul.f32 %v662, 0.5
        %v699 = vmul.f32 %v665, 0.5
        %v700 = vtanh.pop %v668
        %v701 = vtanh.pop %v669
        %v702 = vtanh.pop %v670
        %v703 = vtanh.pop %v671
        %v704 = vtanh.pop %v672
        %v705 = vtanh.pop %v673
        %v706 = vtanh.pop %v674
        %v707 = vtanh.pop %v675
        %v708 = vtanh.pop %v676
        %v709 = vtanh.pop %v677
        %v710 = vtanh.pop %v678
        %v711 = vtanh.pop %v679
        %v712 = vtanh.pop %v680
        %v713 = vtanh.pop %v681
        %v714 = vtanh.pop %v682
        %v715 = vtanh.pop %v683
        %v716 = vtanh.pop %v684
        %v717 = vtanh.pop %v685
        %v718 = vtanh.pop %v686
        %v719 = vtanh.pop %v687
        %v720 = vtanh.pop %v688
        %v721 = vtanh.pop %v689
        %v722 = vtanh.pop %v690
        %v723 = vtanh.pop %v691
        %v724 = vtanh.pop %v692
        %v725 = vtanh.pop %v693
        %v726 = vtanh.pop %v694
        %v727 = vtanh.pop %v695
        %v728 = vtanh.pop %v696
        %v729 = vtanh.pop %v697
        %v730 = vtanh.pop %v698
        %v731 = vtanh.pop %v699
        %v732 = vmul.f32 %v700, 0.5
        %v733 = vmul.f32 %v701, 0.5
        %v734 = vmul.f32 %v702, 0.5
        %v735 = vmul.f32 %v703, 0.5
        %v736 = vmul.f32 %v704, 0.5
        %v737 = vmul.f32 %v705, 0.5
        %v738 = vmul.f32 %v706, 0.5
        %v739 = vmul.f32 %v707, 0.5
        %v740 = vmul.f32 %v708, 0.5
        %v741 = vmul.f32 %v709, 0.5
        %v742 = vmul.f32 %v710, 0.5
        %v743 = vmul.f32 %v711, 0.5
        %v744 = vmul.f32 %v712, 0.5
        %v745 = vmul.f32 %v713, 0.5
        %v746 = vmul.f32 %v714, 0.5
        %v747 = vmul.f32 %v715, 0.5
        %v748 = vmul.f32 %v716, 0.5
        %v749 = vmul.f32 %v717, 0.5
        %v750 = vmul.f32 %v718, 0.5
        %v751 = vmul.f32 %v719, 0.5
        %v752 = vmul.f32 %v720, 0.5
        %v753 = vmul.f32 %v721, 0.5
        %v754 = vmul.f32 %v722, 0.5
        %v755 = vmul.f32 %v723, 0.5
        %v756 = vmul.f32 %v724, 0.5
        %v757 = vmul.f32 %v725, 0.5
        %v758 = vmul.f32 %v726, 0.5
        %v759 = vmul.f32 %v727, 0.5
        %v760 = vmul.f32 %v728, 0.5
        %v761 = vmul.f32 %v729, 0.5
        %v762 = vmul.f32 %v730, 0.5
        %v763 = vmul.f32 %v731, 0.5
        %v764 = vadd.f32 %v732, 0.5
        %v765 = vadd.f32 %v733, 0.5
        %v766 = vadd.f32 %v734, 0.5
        %v767 = vadd.f32 %v735, 0.5
        %v768 = vadd.f32 %v736, 0.5
        %v769 = vadd.f32 %v737, 0.5
        %v770 = vadd.f32 %v738, 0.5
        %v771 = vadd.f32 %v739, 0.5
        %v772 = vadd.f32 %v740, 0.5
        %v773 = vadd.f32 %v741, 0.5
        %v774 = vadd.f32 %v742, 0.5
        %v775 = vadd.f32 %v743, 0.5
        %v776 = vadd.f32 %v744, 0.5
        %v777 = vadd.f32 %v745, 0.5
        %v778 = vadd.f32 %v746, 0.5
        %v779 = vadd.f32 %v747, 0.5
        %v780 = vadd.f32 %v748, 0.5
        %v781 = vadd.f32 %v749, 0.5
        %v782 = vadd.f32 %v750, 0.5
        %v783 = vadd.f32 %v751, 0.5
        %v784 = vadd.f32 %v752, 0.5
        %v785 = vadd.f32 %v753, 0.5
        %v786 = vadd.f32 %v754, 0.5
        %v787 = vadd.f32 %v755, 0.5
        %v788 = vadd.f32 %v756, 0.5
        %v789 = vadd.f32 %v757, 0.5
        %v790 = vadd.f32 %v758, 0.5
        %v791 = vadd.f32 %v759, 0.5
        %v792 = vadd.f32 %v760, 0.5
        %v793 = vadd.f32 %v761, 0.5
        %v794 = vadd.f32 %v762, 0.5
        %v795 = vadd.f32 %v763, 0.5
        %v796 = vpack.c.bf16 %v765, %v764
        %v797 = vpack.c.bf16 %v767, %v766
        %v798 = vpack.c.bf16 %v769, %v768
        %v799 = vpack.c.bf16 %v771, %v770
        %v800 = vpack.c.bf16 %v773, %v772
        %v801 = vpack.c.bf16 %v775, %v774
        %v802 = vpack.c.bf16 %v777, %v776
        %v803 = vpack.c.bf16 %v779, %v778
        %v804 = vpack.c.bf16 %v781, %v780
        %v805 = vpack.c.bf16 %v783, %v782
        %v806 = vpack.c.bf16 %v785, %v784
        %v807 = vpack.c.bf16 %v787, %v786
        %v808 = vpack.c.bf16 %v789, %v788
        %v809 = vpack.c.bf16 %v791, %v790
        %v810 = vpack.c.bf16 %v793, %v792
        %v811 = vpack.c.bf16 %v795, %v794
        %v812 = vld [vmem:[#allocation7] sm:$0xff]
        %v813 = vld [vmem:[#allocation7 + $0x8] sm:$0xff]
        %v814 = vld [vmem:[#allocation7 + $0x10] sm:$0xff]
        %v815 = vld [vmem:[#allocation7 + $0x18] sm:$0xff]
        %v816 = vld [vmem:[#allocation7 + $0x20] sm:$0xff]
        %v817 = vld [vmem:[#allocation7 + $0x28] sm:$0xff]
        %v818 = vld [vmem:[#allocation7 + $0x30] sm:$0xff]
        %v819 = vld [vmem:[#allocation7 + $0x38] sm:$0xff]
        %v820 = vld [vmem:[#allocation7 + $0x40] sm:$0xff]
        %v821 = vld [vmem:[#allocation7 + $0x48] sm:$0xff]
        %v822 = vld [vmem:[#allocation7 + $0x50] sm:$0xff]
        %v823 = vld [vmem:[#allocation7 + $0x58] sm:$0xff]
        %v824 = vld [vmem:[#allocation7 + $0x60] sm:$0xff]
        %v825 = vld [vmem:[#allocation7 + $0x68] sm:$0xff]
        %v826 = vld [vmem:[#allocation7 + $0x70] sm:$0xff]
        %v827 = vld [vmem:[#allocation7 + $0x78] sm:$0xff]
        %v828 = vld [vmem:[%s4] sm:$0x3]
        %v830 = vlaneseq
        %v831 = vshrl.u32 %v830, 7
        %v832 = vsub.s32 0, %v831
        %v833 = vrot.slane %v828, %v832
        %v834 = vlaneseq
        %v835 = vshrl.u32 %v834, 7
        %v836 = vsub.s32 1, %v835
        %v837 = vrot.slane %v828, %v836
        %v856 = vunpack.c.l.b16 %v812
        %v857 = vunpack.c.h.b16 %v812
        %v858 = vunpack.c.l.b16 %v813
        %v859 = vunpack.c.h.b16 %v813
        %v860 = vunpack.c.l.b16 %v814
        %v861 = vunpack.c.h.b16 %v814
        %v862 = vunpack.c.l.b16 %v815
        %v863 = vunpack.c.h.b16 %v815
        %v864 = vunpack.c.l.b16 %v816
        %v865 = vunpack.c.h.b16 %v816
        %v866 = vunpack.c.l.b16 %v817
        %v867 = vunpack.c.h.b16 %v817
        %v868 = vunpack.c.l.b16 %v818
        %v869 = vunpack.c.h.b16 %v818
        %v870 = vunpack.c.l.b16 %v819
        %v871 = vunpack.c.h.b16 %v819
        %v872 = vunpack.c.l.b16 %v820
        %v873 = vunpack.c.h.b16 %v820
        %v874 = vunpack.c.l.b16 %v821
        %v875 = vunpack.c.h.b16 %v821
        %v876 = vunpack.c.l.b16 %v822
        %v877 = vunpack.c.h.b16 %v822
        %v878 = vunpack.c.l.b16 %v823
        %v879 = vunpack.c.h.b16 %v823
        %v880 = vunpack.c.l.b16 %v824
        %v881 = vunpack.c.h.b16 %v824
        %v882 = vunpack.c.l.b16 %v825
        %v883 = vunpack.c.h.b16 %v825
        %v884 = vunpack.c.l.b16 %v826
        %v885 = vunpack.c.h.b16 %v826
        %v886 = vunpack.c.l.b16 %v827
        %v887 = vunpack.c.h.b16 %v827
        %v888 = vpack.c.b16 %v858, %v856
        %v889 = vpack.c.b16 %v859, %v857
        %v890 = vpack.c.b16 %v862, %v860
        %v891 = vpack.c.b16 %v863, %v861
        %v892 = vpack.c.b16 %v866, %v864
        %v893 = vpack.c.b16 %v867, %v865
        %v894 = vpack.c.b16 %v870, %v868
        %v895 = vpack.c.b16 %v871, %v869
        %v896 = vpack.c.b16 %v874, %v872
        %v897 = vpack.c.b16 %v875, %v873
        %v898 = vpack.c.b16 %v878, %v876
        %v899 = vpack.c.b16 %v879, %v877
        %v900 = vpack.c.b16 %v882, %v880
        %v901 = vpack.c.b16 %v883, %v881
        %v902 = vpack.c.b16 %v886, %v884
        %v903 = vpack.c.b16 %v887, %v885
        %920 = vmatprep.subr.bf16.mxu0 %v889
        %921 = vmatpush1.bf16.msra.mxu0 %v888
        %922 = vmatprep.subr.bf16.mxu0 %v891
        %923 = vmatpush1.bf16.msra.mxu0 %v890
        %924 = vmatprep.subr.bf16.mxu0 %v893
        %925 = vmatpush1.bf16.msra.mxu0 %v892
        %926 = vmatprep.subr.bf16.mxu0 %v895
        %927 = vmatpush1.bf16.msra.mxu0 %v894
        %928 = vmatprep.subr.bf16.mxu0 %v897
        %929 = vmatpush1.bf16.msra.mxu0 %v896
        %930 = vmatprep.subr.bf16.mxu0 %v899
        %931 = vmatpush1.bf16.msra.mxu0 %v898
        %932 = vmatprep.subr.bf16.mxu0 %v901
        %933 = vmatpush1.bf16.msra.mxu0 %v900
        %934 = vmatprep.subr.bf16.mxu0 %v903
        %935 = vmatpush1.bf16.msra.mxu0 %v902
        %936 = vmatprep.subr.bf16.mxu0 0
        %937 = vmatpush1.bf16.msra.mxu0 0
        %938 = vmatprep.subr.bf16.mxu0 0
        %939 = vmatpush1.bf16.msra.mxu0 0
        %940 = vmatprep.subr.bf16.mxu0 0
        %941 = vmatpush1.bf16.msra.mxu0 0
        %942 = vmatprep.subr.bf16.mxu0 0
        %943 = vmatpush1.bf16.msra.mxu0 0
        %944 = vmatprep.subr.bf16.mxu0 0
        %945 = vmatpush1.bf16.msra.mxu0 0
        %946 = vmatprep.subr.bf16.mxu0 0
        %947 = vmatpush1.bf16.msra.mxu0 0
        %948 = vmatprep.subr.bf16.mxu0 0
        %949 = vmatpush1.bf16.msra.mxu0 0
        %950 = vmatprep.subr.bf16.mxu0 0
        %951 = vmatpush1.bf16.msra.mxu0 0
        %952 = vmatprep.mubr.bf16.mxu0 0
        %953 = vmatmul.mubr.bf16.gmra.mrb[0].mxu0 %v796
        %v954 = vpop.f32.mrb[0].mxu0
        %v955 = vadd.f32 %v833, %v954
        %v956 = vpop.f32.mrb[0].mxu0
        %v957 = vadd.f32 %v837, %v956
        %v958 = vpop.f32.mrb[0].mxu0
        %v959 = vadd.f32 %v833, %v958
        %v960 = vpop.f32.mrb[0].mxu0
        %v961 = vadd.f32 %v837, %v960
        %962 = vmatprep.mubr.bf16.mxu0 0
        %963 = vmatmul.mubr.bf16.gmra.mrb[0].mxu0 %v797
        %v964 = vpop.f32.mrb[0].mxu0
        %v965 = vadd.f32 %v833, %v964
        %v966 = vpop.f32.mrb[0].mxu0
        %v967 = vadd.f32 %v837, %v966
        %v968 = vpop.f32.mrb[0].mxu0
        %v969 = vadd.f32 %v833, %v968
        %v970 = vpop.f32.mrb[0].mxu0
        %v971 = vadd.f32 %v837, %v970
        %972 = vmatprep.mubr.bf16.mxu0 0
        %973 = vmatmul.mubr.bf16.gmra.mrb[0].mxu0 %v798
        %v974 = vpop.f32.mrb[0].mxu0
        %v975 = vadd.f32 %v833, %v974
        %v976 = vpop.f32.mrb[0].mxu0
        %v977 = vadd.f32 %v837, %v976
        %v978 = vpop.f32.mrb[0].mxu0
        %v979 = vadd.f32 %v833, %v978
        %v980 = vpop.f32.mrb[0].mxu0
        %v981 = vadd.f32 %v837, %v980
        %982 = vmatprep.mubr.bf16.mxu0 0
        %983 = vmatmul.mubr.bf16.gmra.mrb[0].mxu0 %v799
        %v984 = vpop.f32.mrb[0].mxu0
        %v985 = vadd.f32 %v833, %v984
        %v986 = vpop.f32.mrb[0].mxu0
        %v987 = vadd.f32 %v837, %v986
        %v988 = vpop.f32.mrb[0].mxu0
        %v989 = vadd.f32 %v833, %v988
        %v990 = vpop.f32.mrb[0].mxu0
        %v991 = vadd.f32 %v837, %v990
        %992 = vmatprep.mubr.bf16.mxu0 0
        %993 = vmatmul.mubr.bf16.gmra.mrb[0].mxu0 %v800
        %v994 = vpop.f32.mrb[0].mxu0
        %v995 = vadd.f32 %v833, %v994
        %v996 = vpop.f32.mrb[0].mxu0
        %v997 = vadd.f32 %v837, %v996
        %v998 = vpop.f32.mrb[0].mxu0
        %v999 = vadd.f32 %v833, %v998
        %v1000 = vpop.f32.mrb[0].mxu0
        %v1001 = vadd.f32 %v837, %v1000
        %1002 = vmatprep.mubr.bf16.mxu0 0
        %1003 = vmatmul.mubr.bf16.gmra.mrb[0].mxu0 %v801
        %v1004 = vpop.f32.mrb[0].mxu0
        %v1005 = vadd.f32 %v833, %v1004
        %v1006 = vpop.f32.mrb[0].mxu0
        %v1007 = vadd.f32 %v837, %v1006
        %v1008 = vpop.f32.mrb[0].mxu0
        %v1009 = vadd.f32 %v833, %v1008
        %v1010 = vpop.f32.mrb[0].mxu0
        %v1011 = vadd.f32 %v837, %v1010
        %1012 = vmatprep.mubr.bf16.mxu0 0
        %1013 = vmatmul.mubr.bf16.gmra.mrb[0].mxu0 %v802
        %v1014 = vpop.f32.mrb[0].mxu0
        %v1015 = vadd.f32 %v833, %v1014
        %v1016 = vpop.f32.mrb[0].mxu0
        %v1017 = vadd.f32 %v837, %v1016
        %v1018 = vpop.f32.mrb[0].mxu0
        %v1019 = vadd.f32 %v833, %v1018
        %v1020 = vpop.f32.mrb[0].mxu0
        %v1021 = vadd.f32 %v837, %v1020
        %1022 = vmatprep.mubr.bf16.mxu0 0
        %1023 = vmatmul.mubr.bf16.gmra.mrb[0].mxu0 %v803
        %v1024 = vpop.f32.mrb[0].mxu0
        %v1025 = vadd.f32 %v833, %v1024
        %v1026 = vpop.f32.mrb[0].mxu0
        %v1027 = vadd.f32 %v837, %v1026
        %v1028 = vpop.f32.mrb[0].mxu0
        %v1029 = vadd.f32 %v833, %v1028
        %v1030 = vpop.f32.mrb[0].mxu0
        %v1031 = vadd.f32 %v837, %v1030
        %1032 = vmatprep.mubr.bf16.mxu0 0
        %1033 = vmatmul.mubr.bf16.gmra.mrb[0].mxu0 %v804
        %v1034 = vpop.f32.mrb[0].mxu0
        %v1035 = vadd.f32 %v833, %v1034
        %v1036 = vpop.f32.mrb[0].mxu0
        %v1037 = vadd.f32 %v837, %v1036
        %v1038 = vpop.f32.mrb[0].mxu0
        %v1039 = vadd.f32 %v833, %v1038
        %v1040 = vpop.f32.mrb[0].mxu0
        %v1041 = vadd.f32 %v837, %v1040
        %1042 = vmatprep.mubr.bf16.mxu0 0
        %1043 = vmatmul.mubr.bf16.gmra.mrb[0].mxu0 %v805
        %v1044 = vpop.f32.mrb[0].mxu0
        %v1045 = vadd.f32 %v833, %v1044
        %v1046 = vpop.f32.mrb[0].mxu0
        %v1047 = vadd.f32 %v837, %v1046
        %v1048 = vpop.f32.mrb[0].mxu0
        %v1049 = vadd.f32 %v833, %v1048
        %v1050 = vpop.f32.mrb[0].mxu0
        %v1051 = vadd.f32 %v837, %v1050
        %1052 = vmatprep.mubr.bf16.mxu0 0
        %1053 = vmatmul.mubr.bf16.gmra.mrb[0].mxu0 %v806
        %v1054 = vpop.f32.mrb[0].mxu0
        %v1055 = vadd.f32 %v833, %v1054
        %v1056 = vpop.f32.mrb[0].mxu0
        %v1057 = vadd.f32 %v837, %v1056
        %v1058 = vpop.f32.mrb[0].mxu0
        %v1059 = vadd.f32 %v833, %v1058
        %v1060 = vpop.f32.mrb[0].mxu0
        %v1061 = vadd.f32 %v837, %v1060
        %1062 = vmatprep.mubr.bf16.mxu0 0
        %1063 = vmatmul.mubr.bf16.gmra.mrb[0].mxu0 %v807
        %v1064 = vpop.f32.mrb[0].mxu0
        %v1065 = vadd.f32 %v833, %v1064
        %v1066 = vpop.f32.mrb[0].mxu0
        %v1067 = vadd.f32 %v837, %v1066
        %v1068 = vpop.f32.mrb[0].mxu0
        %v1069 = vadd.f32 %v833, %v1068
        %v1070 = vpop.f32.mrb[0].mxu0
        %v1071 = vadd.f32 %v837, %v1070
        %1072 = vmatprep.mubr.bf16.mxu0 0
        %1073 = vmatmul.mubr.bf16.gmra.mrb[0].mxu0 %v808
        %v1074 = vpop.f32.mrb[0].mxu0
        %v1075 = vadd.f32 %v833, %v1074
        %v1076 = vpop.f32.mrb[0].mxu0
        %v1077 = vadd.f32 %v837, %v1076
        %v1078 = vpop.f32.mrb[0].mxu0
        %v1079 = vadd.f32 %v833, %v1078
        %v1080 = vpop.f32.mrb[0].mxu0
        %v1081 = vadd.f32 %v837, %v1080
        %1082 = vmatprep.mubr.bf16.mxu0 0
        %1083 = vmatmul.mubr.bf16.gmra.mrb[0].mxu0 %v809
        %v1084 = vpop.f32.mrb[0].mxu0
        %v1085 = vadd.f32 %v833, %v1084
        %v1086 = vpop.f32.mrb[0].mxu0
        %v1087 = vadd.f32 %v837, %v1086
        %v1088 = vpop.f32.mrb[0].mxu0
        %v1089 = vadd.f32 %v833, %v1088
        %v1090 = vpop.f32.mrb[0].mxu0
        %v1091 = vadd.f32 %v837, %v1090
        %1092 = vmatprep.mubr.bf16.mxu0 0
        %1093 = vmatmul.mubr.bf16.gmra.mrb[0].mxu0 %v810
        %v1094 = vpop.f32.mrb[0].mxu0
        %v1095 = vadd.f32 %v833, %v1094
        %v1096 = vpop.f32.mrb[0].mxu0
        %v1097 = vadd.f32 %v837, %v1096
        %v1098 = vpop.f32.mrb[0].mxu0
        %v1099 = vadd.f32 %v833, %v1098
        %v1100 = vpop.f32.mrb[0].mxu0
        %v1101 = vadd.f32 %v837, %v1100
        %1102 = vmatprep.mubr.bf16.mxu0 0
        %1103 = vmatmul.mubr.bf16.gmra.mrb[0].mxu0 %v811
        %v1104 = vpop.f32.mrb[0].mxu0
        %v1105 = vadd.f32 %v833, %v1104
        %v1106 = vpop.f32.mrb[0].mxu0
        %v1107 = vadd.f32 %v837, %v1106
        %v1108 = vpop.f32.mrb[0].mxu0
        %v1109 = vadd.f32 %v833, %v1108
        %v1110 = vpop.f32.mrb[0].mxu0
        %v1111 = vadd.f32 %v837, %v1110
        %1112 = vdwg.mxu0
        %v1113 = vmul.f32 %v955, 0.5
        %v1114 = vmul.f32 %v957, 0.5
        %v1115 = vmul.f32 %v959, 0.5
        %v1116 = vmul.f32 %v961, 0.5
        %v1117 = vmul.f32 %v965, 0.5
        %v1118 = vmul.f32 %v967, 0.5
        %v1119 = vmul.f32 %v969, 0.5
        %v1120 = vmul.f32 %v971, 0.5
        %v1121 = vmul.f32 %v975, 0.5
        %v1122 = vmul.f32 %v977, 0.5
        %v1123 = vmul.f32 %v979, 0.5
        %v1124 = vmul.f32 %v981, 0.5
        %v1125 = vmul.f32 %v985, 0.5
        %v1126 = vmul.f32 %v987, 0.5
        %v1127 = vmul.f32 %v989, 0.5
        %v1128 = vmul.f32 %v991, 0.5
        %v1129 = vmul.f32 %v995, 0.5
        %v1130 = vmul.f32 %v997, 0.5
        %v1131 = vmul.f32 %v999, 0.5
        %v1132 = vmul.f32 %v1001, 0.5
        %v1133 = vmul.f32 %v1005, 0.5
        %v1134 = vmul.f32 %v1007, 0.5
        %v1135 = vmul.f32 %v1009, 0.5
        %v1136 = vmul.f32 %v1011, 0.5
        %v1137 = vmul.f32 %v1015, 0.5
        %v1138 = vmul.f32 %v1017, 0.5
        %v1139 = vmul.f32 %v1019, 0.5
        %v1140 = vmul.f32 %v1021, 0.5
        %v1141 = vmul.f32 %v1025, 0.5
        %v1142 = vmul.f32 %v1027, 0.5
        %v1143 = vmul.f32 %v1029, 0.5
        %v1144 = vmul.f32 %v1031, 0.5
        %v1145 = vmul.f32 %v1035, 0.5
        %v1146 = vmul.f32 %v1037, 0.5
        %v1147 = vmul.f32 %v1039, 0.5
        %v1148 = vmul.f32 %v1041, 0.5
        %v1149 = vmul.f32 %v1045, 0.5
        %v1150 = vmul.f32 %v1047, 0.5
        %v1151 = vmul.f32 %v1049, 0.5
        %v1152 = vmul.f32 %v1051, 0.5
        %v1153 = vmul.f32 %v1055, 0.5
        %v1154 = vmul.f32 %v1057, 0.5
        %v1155 = vmul.f32 %v1059, 0.5
        %v1156 = vmul.f32 %v1061, 0.5
        %v1157 = vmul.f32 %v1065, 0.5
        %v1158 = vmul.f32 %v1067, 0.5
        %v1159 = vmul.f32 %v1069, 0.5
        %v1160 = vmul.f32 %v1071, 0.5
        %v1161 = vmul.f32 %v1075, 0.5
        %v1162 = vmul.f32 %v1077, 0.5
        %v1163 = vmul.f32 %v1079, 0.5
        %v1164 = vmul.f32 %v1081, 0.5
        %v1165 = vmul.f32 %v1085, 0.5
        %v1166 = vmul.f32 %v1087, 0.5
        %v1167 = vmul.f32 %v1089, 0.5
        %v1168 = vmul.f32 %v1091, 0.5
        %v1169 = vmul.f32 %v1095, 0.5
        %v1170 = vmul.f32 %v1097, 0.5
        %v1171 = vmul.f32 %v1099, 0.5
        %v1172 = vmul.f32 %v1101, 0.5
        %v1173 = vmul.f32 %v1105, 0.5
        %v1174 = vmul.f32 %v1107, 0.5
        %v1175 = vmul.f32 %v1109, 0.5
        %v1176 = vmul.f32 %v1111, 0.5
        %v1177 = vtanh.pop %v1113
        %v1178 = vtanh.pop %v1114
        %v1179 = vtanh.pop %v1115
        %v1180 = vtanh.pop %v1116
        %v1181 = vtanh.pop %v1117
        %v1182 = vtanh.pop %v1118
        %v1183 = vtanh.pop %v1119
        %v1184 = vtanh.pop %v1120
        %v1185 = vtanh.pop %v1121
        %v1186 = vtanh.pop %v1122
        %v1187 = vtanh.pop %v1123
        %v1188 = vtanh.pop %v1124
        %v1189 = vtanh.pop %v1125
        %v1190 = vtanh.pop %v1126
        %v1191 = vtanh.pop %v1127
        %v1192 = vtanh.pop %v1128
        %v1193 = vtanh.pop %v1129
        %v1194 = vtanh.pop %v1130
        %v1195 = vtanh.pop %v1131
        %v1196 = vtanh.pop %v1132
        %v1197 = vtanh.pop %v1133
        %v1198 = vtanh.pop %v1134
        %v1199 = vtanh.pop %v1135
        %v1200 = vtanh.pop %v1136
        %v1201 = vtanh.pop %v1137
        %v1202 = vtanh.pop %v1138
        %v1203 = vtanh.pop %v1139
        %v1204 = vtanh.pop %v1140
        %v1205 = vtanh.pop %v1141
        %v1206 = vtanh.pop %v1142
        %v1207 = vtanh.pop %v1143
        %v1208 = vtanh.pop %v1144
        %v1209 = vtanh.pop %v1145
        %v1210 = vtanh.pop %v1146
        %v1211 = vtanh.pop %v1147
        %v1212 = vtanh.pop %v1148
        %v1213 = vtanh.pop %v1149
        %v1214 = vtanh.pop %v1150
        %v1215 = vtanh.pop %v1151
        %v1216 = vtanh.pop %v1152
        %v1217 = vtanh.pop %v1153
        %v1218 = vtanh.pop %v1154
        %v1219 = vtanh.pop %v1155
        %v1220 = vtanh.pop %v1156
        %v1221 = vtanh.pop %v1157
        %v1222 = vtanh.pop %v1158
        %v1223 = vtanh.pop %v1159
        %v1224 = vtanh.pop %v1160
        %v1225 = vtanh.pop %v1161
        %v1226 = vtanh.pop %v1162
        %v1227 = vtanh.pop %v1163
        %v1228 = vtanh.pop %v1164
        %v1229 = vtanh.pop %v1165
        %v1230 = vtanh.pop %v1166
        %v1231 = vtanh.pop %v1167
        %v1232 = vtanh.pop %v1168
        %v1233 = vtanh.pop %v1169
        %v1234 = vtanh.pop %v1170
        %v1235 = vtanh.pop %v1171
        %v1236 = vtanh.pop %v1172
        %v1237 = vtanh.pop %v1173
        %v1238 = vtanh.pop %v1174
        %v1239 = vtanh.pop %v1175
        %v1240 = vtanh.pop %v1176
        %v1241 = vmul.f32 %v1177, 0.5
        %v1242 = vmul.f32 %v1178, 0.5
        %v1243 = vmul.f32 %v1179, 0.5
        %v1244 = vmul.f32 %v1180, 0.5
        %v1245 = vmul.f32 %v1181, 0.5
        %v1246 = vmul.f32 %v1182, 0.5
        %v1247 = vmul.f32 %v1183, 0.5
        %v1248 = vmul.f32 %v1184, 0.5
        %v1249 = vmul.f32 %v1185, 0.5
        %v1250 = vmul.f32 %v1186, 0.5
        %v1251 = vmul.f32 %v1187, 0.5
        %v1252 = vmul.f32 %v1188, 0.5
        %v1253 = vmul.f32 %v1189, 0.5
        %v1254 = vmul.f32 %v1190, 0.5
        %v1255 = vmul.f32 %v1191, 0.5
        %v1256 = vmul.f32 %v1192, 0.5
        %v1257 = vmul.f32 %v1193, 0.5
        %v1258 = vmul.f32 %v1194, 0.5
        %v1259 = vmul.f32 %v1195, 0.5
        %v1260 = vmul.f32 %v1196, 0.5
        %v1261 = vmul.f32 %v1197, 0.5
        %v1262 = vmul.f32 %v1198, 0.5
        %v1263 = vmul.f32 %v1199, 0.5
        %v1264 = vmul.f32 %v1200, 0.5
        %v1265 = vmul.f32 %v1201, 0.5
        %v1266 = vmul.f32 %v1202, 0.5
        %v1267 = vmul.f32 %v1203, 0.5
        %v1268 = vmul.f32 %v1204, 0.5
        %v1269 = vmul.f32 %v1205, 0.5
        %v1270 = vmul.f32 %v1206, 0.5
        %v1271 = vmul.f32 %v1207, 0.5
        %v1272 = vmul.f32 %v1208, 0.5
        %v1273 = vmul.f32 %v1209, 0.5
        %v1274 = vmul.f32 %v1210, 0.5
        %v1275 = vmul.f32 %v1211, 0.5
        %v1276 = vmul.f32 %v1212, 0.5
        %v1277 = vmul.f32 %v1213, 0.5
        %v1278 = vmul.f32 %v1214, 0.5
        %v1279 = vmul.f32 %v1215, 0.5
        %v1280 = vmul.f32 %v1216, 0.5
        %v1281 = vmul.f32 %v1217, 0.5
        %v1282 = vmul.f32 %v1218, 0.5
        %v1283 = vmul.f32 %v1219, 0.5
        %v1284 = vmul.f32 %v1220, 0.5
        %v1285 = vmul.f32 %v1221, 0.5
        %v1286 = vmul.f32 %v1222, 0.5
        %v1287 = vmul.f32 %v1223, 0.5
        %v1288 = vmul.f32 %v1224, 0.5
        %v1289 = vmul.f32 %v1225, 0.5
        %v1290 = vmul.f32 %v1226, 0.5
        %v1291 = vmul.f32 %v1227, 0.5
        %v1292 = vmul.f32 %v1228, 0.5
        %v1293 = vmul.f32 %v1229, 0.5
        %v1294 = vmul.f32 %v1230, 0.5
        %v1295 = vmul.f32 %v1231, 0.5
        %v1296 = vmul.f32 %v1232, 0.5
        %v1297 = vmul.f32 %v1233, 0.5
        %v1298 = vmul.f32 %v1234, 0.5
        %v1299 = vmul.f32 %v1235, 0.5
        %v1300 = vmul.f32 %v1236, 0.5
        %v1301 = vmul.f32 %v1237, 0.5
        %v1302 = vmul.f32 %v1238, 0.5
        %v1303 = vmul.f32 %v1239, 0.5
        %v1304 = vmul.f32 %v1240, 0.5
        %v1305 = vadd.f32 %v1241, 0.5
        %v1306 = vadd.f32 %v1242, 0.5
        %v1307 = vadd.f32 %v1243, 0.5
        %v1308 = vadd.f32 %v1244, 0.5
        %v1309 = vadd.f32 %v1245, 0.5
        %v1310 = vadd.f32 %v1246, 0.5
        %v1311 = vadd.f32 %v1247, 0.5
        %v1312 = vadd.f32 %v1248, 0.5
        %v1313 = vadd.f32 %v1249, 0.5
        %v1314 = vadd.f32 %v1250, 0.5
        %v1315 = vadd.f32 %v1251, 0.5
        %v1316 = vadd.f32 %v1252, 0.5
        %v1317 = vadd.f32 %v1253, 0.5
        %v1318 = vadd.f32 %v1254, 0.5
        %v1319 = vadd.f32 %v1255, 0.5
        %v1320 = vadd.f32 %v1256, 0.5
        %v1321 = vadd.f32 %v1257, 0.5
        %v1322 = vadd.f32 %v1258, 0.5
        %v1323 = vadd.f32 %v1259, 0.5
        %v1324 = vadd.f32 %v1260, 0.5
        %v1325 = vadd.f32 %v1261, 0.5
        %v1326 = vadd.f32 %v1262, 0.5
        %v1327 = vadd.f32 %v1263, 0.5
        %v1328 = vadd.f32 %v1264, 0.5
        %v1329 = vadd.f32 %v1265, 0.5
        %v1330 = vadd.f32 %v1266, 0.5
        %v1331 = vadd.f32 %v1267, 0.5
        %v1332 = vadd.f32 %v1268, 0.5
        %v1333 = vadd.f32 %v1269, 0.5
        %v1334 = vadd.f32 %v1270, 0.5
        %v1335 = vadd.f32 %v1271, 0.5
        %v1336 = vadd.f32 %v1272, 0.5
        %v1337 = vadd.f32 %v1273, 0.5
        %v1338 = vadd.f32 %v1274, 0.5
        %v1339 = vadd.f32 %v1275, 0.5
        %v1340 = vadd.f32 %v1276, 0.5
        %v1341 = vadd.f32 %v1277, 0.5
        %v1342 = vadd.f32 %v1278, 0.5
        %v1343 = vadd.f32 %v1279, 0.5
        %v1344 = vadd.f32 %v1280, 0.5
        %v1345 = vadd.f32 %v1281, 0.5
        %v1346 = vadd.f32 %v1282, 0.5
        %v1347 = vadd.f32 %v1283, 0.5
        %v1348 = vadd.f32 %v1284, 0.5
        %v1349 = vadd.f32 %v1285, 0.5
        %v1350 = vadd.f32 %v1286, 0.5
        %v1351 = vadd.f32 %v1287, 0.5
        %v1352 = vadd.f32 %v1288, 0.5
        %v1353 = vadd.f32 %v1289, 0.5
        %v1354 = vadd.f32 %v1290, 0.5
        %v1355 = vadd.f32 %v1291, 0.5
        %v1356 = vadd.f32 %v1292, 0.5
        %v1357 = vadd.f32 %v1293, 0.5
        %v1358 = vadd.f32 %v1294, 0.5
        %v1359 = vadd.f32 %v1295, 0.5
        %v1360 = vadd.f32 %v1296, 0.5
        %v1361 = vadd.f32 %v1297, 0.5
        %v1362 = vadd.f32 %v1298, 0.5
        %v1363 = vadd.f32 %v1299, 0.5
        %v1364 = vadd.f32 %v1300, 0.5
        %v1365 = vadd.f32 %v1301, 0.5
        %v1366 = vadd.f32 %v1302, 0.5
        %v1367 = vadd.f32 %v1303, 0.5
        %v1368 = vadd.f32 %v1304, 0.5
        %v1369 = vpack.c.bf16 %v1307, %v1305
        %v1370 = vpack.c.bf16 %v1308, %v1306
        %v1371 = vpack.c.bf16 %v1311, %v1309
        %v1372 = vpack.c.bf16 %v1312, %v1310
        %v1373 = vpack.c.bf16 %v1315, %v1313
        %v1374 = vpack.c.bf16 %v1316, %v1314
        %v1375 = vpack.c.bf16 %v1319, %v1317
        %v1376 = vpack.c.bf16 %v1320, %v1318
        %v1377 = vpack.c.bf16 %v1323, %v1321
        %v1378 = vpack.c.bf16 %v1324, %v1322
        %v1379 = vpack.c.bf16 %v1327, %v1325
        %v1380 = vpack.c.bf16 %v1328, %v1326
        %v1381 = vpack.c.bf16 %v1331, %v1329
        %v1382 = vpack.c.bf16 %v1332, %v1330
        %v1383 = vpack.c.bf16 %v1335, %v1333
        %v1384 = vpack.c.bf16 %v1336, %v1334
        %v1385 = vpack.c.bf16 %v1339, %v1337
        %v1386 = vpack.c.bf16 %v1340, %v1338
        %v1387 = vpack.c.bf16 %v1343, %v1341
        %v1388 = vpack.c.bf16 %v1344, %v1342
        %v1389 = vpack.c.bf16 %v1347, %v1345
        %v1390 = vpack.c.bf16 %v1348, %v1346
        %v1391 = vpack.c.bf16 %v1351, %v1349
        %v1392 = vpack.c.bf16 %v1352, %v1350
        %v1393 = vpack.c.bf16 %v1355, %v1353
        %v1394 = vpack.c.bf16 %v1356, %v1354
        %v1395 = vpack.c.bf16 %v1359, %v1357
        %v1396 = vpack.c.bf16 %v1360, %v1358
        %v1397 = vpack.c.bf16 %v1363, %v1361
        %v1398 = vpack.c.bf16 %v1364, %v1362
        %v1399 = vpack.c.bf16 %v1367, %v1365
        %v1400 = vpack.c.bf16 %v1368, %v1366
        %v1433 = vunpack.c.l.b16 %v1369
        %v1434 = vunpack.c.l.b16 %v1370
        %v1435 = vunpack.c.h.b16 %v1369
        %v1436 = vunpack.c.h.b16 %v1370
        %v1437 = vunpack.c.l.b16 %v1371
        %v1438 = vunpack.c.l.b16 %v1372
        %v1439 = vunpack.c.h.b16 %v1371
        %v1440 = vunpack.c.h.b16 %v1372
        %v1441 = vunpack.c.l.b16 %v1373
        %v1442 = vunpack.c.l.b16 %v1374
        %v1443 = vunpack.c.h.b16 %v1373
        %v1444 = vunpack.c.h.b16 %v1374
        %v1445 = vunpack.c.l.b16 %v1375
        %v1446 = vunpack.c.l.b16 %v1376
        %v1447 = vunpack.c.h.b16 %v1375
        %v1448 = vunpack.c.h.b16 %v1376
        %v1449 = vunpack.c.l.b16 %v1377
        %v1450 = vunpack.c.l.b16 %v1378
        %v1451 = vunpack.c.h.b16 %v1377
        %v1452 = vunpack.c.h.b16 %v1378
        %v1453 = vunpack.c.l.b16 %v1379
        %v1454 = vunpack.c.l.b16 %v1380
        %v1455 = vunpack.c.h.b16 %v1379
        %v1456 = vunpack.c.h.b16 %v1380
        %v1457 = vunpack.c.l.b16 %v1381
        %v1458 = vunpack.c.l.b16 %v1382
        %v1459 = vunpack.c.h.b16 %v1381
        %v1460 = vunpack.c.h.b16 %v1382
        %v1461 = vunpack.c.l.b16 %v1383
        %v1462 = vunpack.c.l.b16 %v1384
        %v1463 = vunpack.c.h.b16 %v1383
        %v1464 = vunpack.c.h.b16 %v1384
        %v1465 = vunpack.c.l.b16 %v1385
        %v1466 = vunpack.c.l.b16 %v1386
        %v1467 = vunpack.c.h.b16 %v1385
        %v1468 = vunpack.c.h.b16 %v1386
        %v1469 = vunpack.c.l.b16 %v1387
        %v1470 = vunpack.c.l.b16 %v1388
        %v1471 = vunpack.c.h.b16 %v1387
        %v1472 = vunpack.c.h.b16 %v1388
        %v1473 = vunpack.c.l.b16 %v1389
        %v1474 = vunpack.c.l.b16 %v1390
        %v1475 = vunpack.c.h.b16 %v1389
        %v1476 = vunpack.c.h.b16 %v1390
        %v1477 = vunpack.c.l.b16 %v1391
        %v1478 = vunpack.c.l.b16 %v1392
        %v1479 = vunpack.c.h.b16 %v1391
        %v1480 = vunpack.c.h.b16 %v1392
        %v1481 = vunpack.c.l.b16 %v1393
        %v1482 = vunpack.c.l.b16 %v1394
        %v1483 = vunpack.c.h.b16 %v1393
        %v1484 = vunpack.c.h.b16 %v1394
        %v1485 = vunpack.c.l.b16 %v1395
        %v1486 = vunpack.c.l.b16 %v1396
        %v1487 = vunpack.c.h.b16 %v1395
        %v1488 = vunpack.c.h.b16 %v1396
        %v1489 = vunpack.c.l.b16 %v1397
        %v1490 = vunpack.c.l.b16 %v1398
        %v1491 = vunpack.c.h.b16 %v1397
        %v1492 = vunpack.c.h.b16 %v1398
        %v1493 = vunpack.c.l.b16 %v1399
        %v1494 = vunpack.c.l.b16 %v1400
        %v1495 = vunpack.c.h.b16 %v1399
        %v1496 = vunpack.c.h.b16 %v1400
        %v1497 = vpack.c.b16 %v1434, %v1433
        %v1498 = vpack.c.b16 %v1436, %v1435
        %v1499 = vpack.c.b16 %v1438, %v1437
        %v1500 = vpack.c.b16 %v1440, %v1439
        %v1501 = vpack.c.b16 %v1442, %v1441
        %v1502 = vpack.c.b16 %v1444, %v1443
        %v1503 = vpack.c.b16 %v1446, %v1445
        %v1504 = vpack.c.b16 %v1448, %v1447
        %v1505 = vpack.c.b16 %v1450, %v1449
        %v1506 = vpack.c.b16 %v1452, %v1451
        %v1507 = vpack.c.b16 %v1454, %v1453
        %v1508 = vpack.c.b16 %v1456, %v1455
        %v1509 = vpack.c.b16 %v1458, %v1457
        %v1510 = vpack.c.b16 %v1460, %v1459
        %v1511 = vpack.c.b16 %v1462, %v1461
        %v1512 = vpack.c.b16 %v1464, %v1463
        %v1513 = vpack.c.b16 %v1466, %v1465
        %v1514 = vpack.c.b16 %v1468, %v1467
        %v1515 = vpack.c.b16 %v1470, %v1469
        %v1516 = vpack.c.b16 %v1472, %v1471
        %v1517 = vpack.c.b16 %v1474, %v1473
        %v1518 = vpack.c.b16 %v1476, %v1475
        %v1519 = vpack.c.b16 %v1478, %v1477
        %v1520 = vpack.c.b16 %v1480, %v1479
        %v1521 = vpack.c.b16 %v1482, %v1481
        %v1522 = vpack.c.b16 %v1484, %v1483
        %v1523 = vpack.c.b16 %v1486, %v1485
        %v1524 = vpack.c.b16 %v1488, %v1487
        %v1525 = vpack.c.b16 %v1490, %v1489
        %v1526 = vpack.c.b16 %v1492, %v1491
        %v1527 = vpack.c.b16 %v1494, %v1493
        %v1528 = vpack.c.b16 %v1496, %v1495
        %1561 = vst [vmem:[%s272] sm:$0xff] %v1497
        %1562 = vst [vmem:[%s272 + $0x8] sm:$0xff] %v1498
        %1563 = vst [vmem:[%s272 + $0x10] sm:$0xff] %v1499
        %1564 = vst [vmem:[%s272 + $0x18] sm:$0xff] %v1500
        %1565 = vst [vmem:[%s272 + $0x20] sm:$0xff] %v1501
        %1566 = vst [vmem:[%s272 + $0x28] sm:$0xff] %v1502
        %1567 = vst [vmem:[%s272 + $0x30] sm:$0xff] %v1503
        %1568 = vst [vmem:[%s272 + $0x38] sm:$0xff] %v1504
        %1569 = vst [vmem:[%s272 + $0x40] sm:$0xff] %v1505
        %1570 = vst [vmem:[%s272 + $0x48] sm:$0xff] %v1506
        %1571 = vst [vmem:[%s272 + $0x50] sm:$0xff] %v1507
        %1572 = vst [vmem:[%s272 + $0x58] sm:$0xff] %v1508
        %1573 = vst [vmem:[%s272 + $0x60] sm:$0xff] %v1509
        %1574 = vst [vmem:[%s272 + $0x68] sm:$0xff] %v1510
        %1575 = vst [vmem:[%s272 + $0x70] sm:$0xff] %v1511
        %1576 = vst [vmem:[%s272 + $0x78] sm:$0xff] %v1512
        %1577 = vst [vmem:[%s272 + $0x80] sm:$0xff] %v1513
        %1578 = vst [vmem:[%s272 + $0x88] sm:$0xff] %v1514
        %1579 = vst [vmem:[%s272 + $0x90] sm:$0xff] %v1515
        %1580 = vst [vmem:[%s272 + $0x98] sm:$0xff] %v1516
        %1581 = vst [vmem:[%s272 + $0xa0] sm:$0xff] %v1517
        %1582 = vst [vmem:[%s272 + $0xa8] sm:$0xff] %v1518
        %1583 = vst [vmem:[%s272 + $0xb0] sm:$0xff] %v1519
        %1584 = vst [vmem:[%s272 + $0xb8] sm:$0xff] %v1520
        %1585 = vst [vmem:[%s272 + $0xc0] sm:$0xff] %v1521
        %1586 = vst [vmem:[%s272 + $0xc8] sm:$0xff] %v1522
        %1587 = vst [vmem:[%s272 + $0xd0] sm:$0xff] %v1523
        %1588 = vst [vmem:[%s272 + $0xd8] sm:$0xff] %v1524
        %1589 = vst [vmem:[%s272 + $0xe0] sm:$0xff] %v1525
        %1590 = vst [vmem:[%s272 + $0xe8] sm:$0xff] %v1526
        %1591 = vst [vmem:[%s272 + $0xf0] sm:$0xff] %v1527
        %1592 = vst [vmem:[%s272 + $0xf8] sm:$0xff] %v1528
        %s1593 = sand.u32 %s141, 1
        %s1594 = scalar_lea.sflag [#allocation4], %s1593
        %s1595 = sand.u32 %s141, 1
        %s1596 = smul.addr %s1595, 256
        %s1597 = scalar_lea.vmem [#allocation8], %s1596
        // Predicated region
        $region53: #{autoencoder_forward.1} parent=39 // pred_check
          %p1598 = pneg %p151
        $region54: #{autoencoder_forward.1} parent=39 // pred_check_branch
          %1600 = sbr.rel (%p1598) target = $region56
        $region55: #{autoencoder_forward.1} parent=39 // pred_region
          %s1601 = smul.u32 32, %s23
          %s1603 = ssub.s32 4096, 4096
          %1604 = vsyncadd %s1594, %s1603
          %s1605 = smul.addr %s1601, 2
          %s1606 = smul.addr %s1605, 64
          %s1607 = scalar_lea.hbm %s5, %s1606
          %s1608 = sshll.u32 %s1597, 4
          %s1609 = int_to_ptr.vmem [resolvable:$true] %s1608
          %1614 = dma.vmem_to_hbm [thread:$0]  %s1609, 4096, %s1607, %s1594, 128, 128, 8
        $region56: #{autoencoder_forward.1} parent=39 // pred_fallthru
          _
      $region40: #{autoencoder_forward.1} parent=5 // pred_fallthru
        _
      %p1615 = scmp.le.s32.totalorder 2, %s18
      // Predicated region
      $region57: #{autoencoder_forward.1} parent=5 // pred_check
        %p1616 = pneg %p1615
      $region58: #{autoencoder_forward.1} parent=5 // pred_check_branch
        %1618 = sbr.rel (%p1616) target = $region60
      $region59: #{autoencoder_forward.1} parent=5 // pred_region
        %s1619 = ssub.s32 %s18, 2
        // Predicated region
        $region61: #{autoencoder_forward.1} parent=59 // pred_check
          %p1620 = pneg %p157
        $region62: #{autoencoder_forward.1} parent=59 // pred_check_branch
          %1622 = sbr.rel (%p1620) target = $region64
        $region63: #{autoencoder_forward.1} parent=59 // pred_region
          %s1623 = sand.u32 %s142, 1
          %s1624 = scalar_lea.sflag [#allocation4], %s1623
          %s1625 = sand.u32 %s142, 1
          %s1626 = smul.addr %s1625, 256
          %s1627 = scalar_lea.vmem [#allocation8], %s1626
          %1628 = dma.done %s1624, 4096
        $region64: #{autoencoder_forward.1} parent=59 // pred_fallthru
          _
      $region60: #{autoencoder_forward.1} parent=5 // pred_fallthru
        _
    $region6: #{autoencoder_forward.1} parent=1 // loop_footer
      %s22 = sadd.s32 1, %s18
    $region7: #{autoencoder_forward.1} parent=1 // loop_footer_branch
      %17 = sbr.rel target = $region3
    $region8: #{autoencoder_forward.1} parent=1 // loop_exit
      _
    %1629 = vsyncpa [#allocation3], 1
    %s1630 = scalar_lea.sflag [#allocation3], 1
    %1631 = vsyncpa %s1630, 1
    %1632 = vsyncpa [#allocation6], 1
    %1633 = vsyncpa [#allocation4], 1
    %s1634 = scalar_lea.sflag [#allocation4], 1
    %1635 = vsyncpa %s1634, 1

</llo_original>
